<compile_context>
chip_gen: v7x
topology: tpu7x:2x2x1
jax: 0.10.0
libtpu: 0.0.40
codegen_flags: <defaults>
</compile_context>

<pallas_src>
import functools

import jax
import jax.numpy as jnp
from jax import lax
from jax.experimental import pallas as pl
from jax.experimental.pallas import tpu as pltpu


def _round_up(x, m):
    return (x + m - 1) // m * m


def _default_tiles():
    """Per-generation tile defaults (tile_b, tile_n)."""
    try:
        kind = jax.devices()[0].device_kind.lower()
    except Exception:  # pragma: no cover - defensive; never expected on TPU
        kind = ""
    if "v5 lite" in kind or "v5e" in kind or "v5lite" in kind:
        # v5e MXU is 4x128^2: 128 rows already fill it; smaller HBM BW.
        return 128, 1024
    # v6e / v7x: 256-wide MXU, plenty of VMEM for 256x1024 f32 output tiles.
    return 256, 1024


# ----------------------------- Pallas kernel --------------------------------

def _score_kernel(hr_ref, ent_ref, o_ref):
    # hr_ref:  [TB, D]  bf16 precomputed h*r for this batch tile
    # ent_ref: [TN, D]  bf16 tile of the entity embedding table
    # o_ref:   [TB, TN] f32 tile of the score matrix
    #
    # Contract the D axes directly -- no .T / XLU transpose of the RHS tile;
    # MXU accumulates in f32 via preferred_element_type.
    o_ref[...] = lax.dot_general(
        hr_ref[...], ent_ref[...],
        dimension_numbers=(((1,), (1,)), ((), ())),
        preferred_element_type=jnp.float32,
    )


def predict_scores(hr_bf16, ent_bf16, *, tile_b, tile_n):
    """scores[Bp, Np] = hr @ ent^T with one fused Pallas call.

    hr_bf16:  [Bp, Dp] bf16 (Bp % tile_b == 0, Dp % 128 == 0)
    ent_bf16: [Np, Dp] bf16 (Np % tile_n == 0)
    """
    Bp, Dp = hr_bf16.shape
    Np, _ = ent_bf16.shape
    assert Bp % tile_b == 0 and Np % tile_n == 0 and Dp % 128 == 0

    grid = (Bp // tile_b, Np // tile_n)
    return pl.pallas_call(
        _score_kernel,
        out_shape=jax.ShapeDtypeStruct((Bp, Np), jnp.float32),
        grid_spec=pltpu.PrefetchScalarGridSpec(
            num_scalar_prefetch=0,
            grid=grid,
            in_specs=[
                # hr tile is reused across the whole entity axis (j).
                pl.BlockSpec((tile_b, Dp), lambda i, j: (i, 0)),
                # Entity tile changes every step -> the main HBM stream.
                # TODO(synk): add pipeline_mode=pl.Buffered(3) here if the DMA
                # is exposed on v5e after further tile enlargement.
                pl.BlockSpec((tile_n, Dp), lambda i, j: (j, 0)),
            ],
            out_specs=pl.BlockSpec((tile_b, tile_n), lambda i, j: (i, j)),
        ),
        compiler_params=pltpu.CompilerParams(
            # No cross-iteration carry anymore -> both axes independent;
            # lets v7x shard either axis across its two TensorCores.
            dimension_semantics=("parallel", "parallel"),
            # Working set ~3 MiB double-buffered; 40 MiB leaves headroom on
            # v7x's 64 MiB VMEM and exceeds default scoped limits elsewhere.
            vmem_limit_bytes=40 * 1024 * 1024,
        ),
    )(hr_bf16, ent_bf16)


@functools.partial(jax.jit, static_argnames=("tile_b", "tile_n", "num_entities"))
def distmult_all_scores(ent_table, rel_table, ent_bf16_padded, e1, r, *,
                        tile_b, tile_n, num_entities):
    """Fused scoring of ALL examples: gather + h*r + Pallas kernel + slice.

    ent_table / rel_table: f32 embedding tables (gather source only).
    ent_bf16_padded:       [Np, Dp] bf16 cached padded table (built once).
    """
    B = e1.shape[0]
    _, D = ent_table.shape
    Np, Dp = ent_bf16_padded.shape

    # TODO(synk): the row gathers could be fused into the kernel with
    # PrefetchScalarGridSpec(num_scalar_prefetch=1) + pl.Element row specs;
    # kept as jnp.take under jit since they are tiny vs. the table stream.
    h_emb = jnp.take(ent_table, e1, axis=0).astype(jnp.float32)    # [B, D]
    r_emb = jnp.take(rel_table, r, axis=0).astype(jnp.float32)     # [B, D]

    # h*r in f32 on the VPU (v5e has no bf16 VALU), single cast to bf16.
    hr = h_emb * r_emb                                             # [B, D]

    Bp = _round_up(B, tile_b)
    if Bp != B or Dp != D:
        hr = jnp.pad(hr, ((0, Bp - B), (0, Dp - D)))
    hr_bf16 = hr.astype(jnp.bfloat16)

    # TODO(synk): for training-style huge batches (Bp/tile_b >> Np/tile_n),
    # swap grid order so the entity tile is held across batch tiles instead.
    scores = predict_scores(hr_bf16, ent_bf16_padded,
                            tile_b=tile_b, tile_n=tile_n)
    return scores[:B, :num_entities]


# --------------------------- LFramework (JAX) --------------------------------

class LFrameworkJax:
    """Minimal JAX/Pallas re-implementation of LFramework.forward()."""

    def __init__(self, num_entities, num_relations, dim, batch_size, key):
        self.batch_size = batch_size
        self.dummy_e = 0
        self.dummy_r = 0
        self.num_entities = num_entities
        k_e, k_r = jax.random.split(key)
        self.entity_embeddings = (
            jax.random.normal(k_e, (num_entities, dim), jnp.float32) * 0.1)
        self.relation_embeddings = (
            jax.random.normal(k_r, (num_relations, dim), jnp.float32) * 0.1)

        # Tile sizes per chip generation, clamped to the entity count.
        tb, tn = _default_tiles()
        self.tile_b = tb
        self.tile_n = min(tn, _round_up(num_entities, 128))

        # Cache the padded bf16 entity table ONCE (perf feedback: the per-call
        # pad+cast re-read the whole f32 table and wrote a bf16 copy to HBM
        # on every forward()).  bf16 halves the kernel's HBM stream; the MXU
        # still accumulates in f32.
        Dp = _round_up(dim, 128)
        Np = _round_up(num_entities, self.tile_n)
        ent = self.entity_embeddings
        if Np != num_entities or Dp != dim:
            ent = jnp.pad(ent, ((0, Np - num_entities), (0, Dp - dim)))
        self.ent_bf16_padded = jax.block_until_ready(ent.astype(jnp.bfloat16))

    # format_batch: triples -> index arrays (host glue, mirrors original).
    def format_batch(self, batch_data):
        e1 = jnp.asarray([t[0] for t in batch_data], dtype=jnp.int32)
        r = jnp.asarray([t[2] for t in batch_data], dtype=jnp.int32)
        return e1, r

    # make_full_batch: pad with dummy examples (kept for API fidelity).
    def make_full_batch(self, mini_batch, batch_size):
        dummy_example = (self.dummy_e, self.dummy_e, self.dummy_r)
        mini_batch = list(mini_batch)
        for _ in range(batch_size - len(mini_batch)):
            mini_batch.append(dummy_example)
        return mini_batch

    def _score(self, e1, r):
        return distmult_all_scores(
            self.entity_embeddings, self.relation_embeddings,
            self.ent_bf16_padded, e1, r,
            tile_b=self.tile_b, tile_n=self.tile_n,
            num_entities=self.num_entities)

    # predict: score one mini-batch (same fused kernel path).
    def predict(self, mini_batch):
        e1, r = self.format_batch(mini_batch)
        return self._score(e1, r)

    # forward: the original loop pads each short mini-batch with dummies,
    # scores it, trims the padding and concatenates.  Rows are scored
    # independently and padding rows are discarded, so scoring all examples
    # in ONE fused pallas_call (entity table streamed once, batch padded to
    # a tile multiple inside the kernel wrapper) is mathematically identical
    # and removes per-mini-batch launch + table-restreaming overhead.
    def forward(self, examples, verbose=False):
        e1 = jnp.asarray([t[0] for t in examples], dtype=jnp.int32)
        r = jnp.asarray([t[2] for t in examples], dtype=jnp.int32)
        return self._score(e1, r)


# --------------------------------- main --------------------------------------

if __name__ == "__main__":
    key = jax.random.PRNGKey(0)

    NUM_ENTITIES = 1024
    NUM_RELATIONS = 16
    DIM = 128
    BATCH_SIZE = 8   # original mini-batch size (kept for API fidelity)

    framework = LFrameworkJax(NUM_ENTITIES, NUM_RELATIONS, DIM, BATCH_SIZE, key)

    # Deterministic example triples (e1, e2, r).  200 examples -> internally
    # padded to one or two batch tiles; entity axis is a single 1024 tile.
    k1, k2, k3 = jax.random.split(jax.random.PRNGKey(0), 3)
    n_examples = 200
    e1s = jax.random.randint(k1, (n_examples,), 0, NUM_ENTITIES)
    e2s = jax.random.randint(k2, (n_examples,), 0, NUM_ENTITIES)
    rs = jax.random.randint(k3, (n_examples,), 0, NUM_RELATIONS)
    examples = [(int(e1s[i]), int(e2s[i]), int(rs[i])) for i in range(n_examples)]

    scores = framework.forward(examples)
    scores = jax.block_until_ready(scores)
    assert scores.shape == (n_examples, NUM_ENTITIES), scores.shape

    # Reference checks.
    e1_all = jnp.asarray([t[0] for t in examples], dtype=jnp.int32)
    r_all = jnp.asarray([t[2] for t in examples], dtype=jnp.int32)
    hr_f32 = (framework.entity_embeddings[e1_all]
              * framework.relation_embeddings[r_all])
    # (a) numerics-matched reference (bf16 MXU inputs, f32 accumulation)
    ref_bf16 = jnp.dot(hr_f32.astype(jnp.bfloat16),
                       framework.entity_embeddings.astype(jnp.bfloat16).T,
                       preferred_element_type=jnp.float32)
    # (b) full-f32 reference (loose tolerance for the bf16 casts)
    ref_f32 = hr_f32 @ framework.entity_embeddings.T

    assert jnp.allclose(scores, ref_bf16, atol=2e-3, rtol=2e-3), (
        float(jnp.max(jnp.abs(scores - ref_bf16))))
    assert jnp.allclose(scores, ref_f32, atol=5e-2, rtol=5e-2), (
        float(jnp.max(jnp.abs(scores - ref_f32))))

    # TODO(synk): run_train / save_checkpoint / load_checkpoint /
    # export_to_embedding_projector are host-side training-loop and I/O
    # utilities with no Pallas equivalent; only the forward() scoring hot
    # path is implemented as a kernel.
    # TODO(synk): optionally emit bf16 scores / fuse per-row top-k into the
    # kernel epilogue if the downstream consumer tolerates it (removes the
    # dominant f32 [B, N] HBM writeback).
    print("KERNEL_OK")
</pallas_src>

<mosaic_0001>
module attributes {stable_mosaic.version = 11 : i64} {
  func.func @_score_kernel(%arg0: i32, %arg1: i32, %arg2: memref<256x128xbf16, #tpu.memory_space<vmem>>, %arg3: memref<1024x128xbf16, #tpu.memory_space<vmem>>, %arg4: memref<256x1024xf32, #tpu.memory_space<vmem>>) attributes {dimension_semantics = [#tpu.dimension_semantics<parallel>, #tpu.dimension_semantics<parallel>], iteration_bounds = array<i64: 1, 1>, scalar_prefetch = 0 : i64, scratch_operands = 0 : i64, tpu.core_type = #tpu.core_type<tc>, window_params = [{transform_indices = @transform_0, window_bounds = array<i64: 256, 128>}, {transform_indices = @transform_1, window_bounds = array<i64: 1024, 128>}, {transform_indices = @transform_2, window_bounds = array<i64: 256, 1024>}]} {
    %c0 = arith.constant 0 : index
    %c0_0 = arith.constant 0 : index
    %0 = vector.load %arg2[%c0, %c0_0] : memref<256x128xbf16, #tpu.memory_space<vmem>>, vector<256x128xbf16>
    %c0_1 = arith.constant 0 : index
    %c0_2 = arith.constant 0 : index
    %1 = vector.load %arg3[%c0_1, %c0_2] : memref<1024x128xbf16, #tpu.memory_space<vmem>>, vector<1024x128xbf16>
    %cst = arith.constant dense<0.000000e+00> : vector<256x1024xf32>
    %2 = tpu.matmul %0, %1, %cst {dimension_numbers = #tpu.dot_dimension_numbers<[1], [1], [0], [0], [0, 0, 1, 0], [], []>} : vector<256x128xbf16>, vector<1024x128xbf16>, vector<256x1024xf32> -> vector<256x1024xf32>
    %c0_3 = arith.constant 0 : index
    %c0_4 = arith.constant 0 : index
    %3 = vector.load %arg4[%c0_3, %c0_4] : memref<256x1024xf32, #tpu.memory_space<vmem>>, vector<256x1024xf32>
    tpu.vector_store %arg4[%c0_3, %c0_4], %2 {strides = array<i32>} : memref<256x1024xf32, #tpu.memory_space<vmem>>, vector<256x1024xf32>,
    return
  }
  func.func @transform_0(%arg0: i32, %arg1: i32) -> (i32, i32) {
    %c0_i32 = arith.constant 0 : i32
    %c0_i32_0 = arith.constant 0 : i32
    return %arg0, %c0_i32 : i32, i32
  }
  func.func @transform_1(%arg0: i32, %arg1: i32) -> (i32, i32) {
    %c0_i32 = arith.constant 0 : i32
    %c0_i32_0 = arith.constant 0 : i32
    return %arg1, %c0_i32 : i32, i32
  }
  func.func @transform_2(%arg0: i32, %arg1: i32) -> (i32, i32) {
    %c0_i32 = arith.constant 0 : i32
    return %arg0, %arg1 : i32, i32
  }
}

</mosaic_0001>

<llo_original>
// kernel: distmult_all_scores.1
$region0: #{distmult_all_scores.1}
  #allocation0 [shape = 'u32[]', space=smem, size = 0x4, offset = 0x4, fixed_abs, tag = 'smem constant byte address 0x4 - core index']
  #allocation1 [shape = 'u32[144,128]{1,0:T(1,128)}', space=vmem, size = 0x12000, scoped, tag = 'internal scratch']
  %s0 = inlined_call_operand.vmem [shape: bf16[256,128], index: 0, kind: input, shape index: {}]
  %s1 = inlined_call_operand.vmem [shape: bf16[1024,128], index: 1, kind: input, shape index: {}]
  %s2 = inlined_call_operand.vmem [shape: f32[256,1024], index: 2, kind: output, shape index: {}]
  %s3 = sld [smem:[#allocation0]]
  $region18: #{distmult_all_scores.1} parent=0
    _
  %s5 = ssub.s32 1, %s3
  %s6 = scalar_select 0, %s5, %s3
  // Predicated region
  $region2: #{distmult_all_scores.1} parent=0 // pred_check
    _
  $region3: #{distmult_all_scores.1} parent=0 // pred_check_branch
    %8 = sbr.rel (0) target = $region5
  $region4: #{distmult_all_scores.1} parent=0 // pred_region
    _
  $region5: #{distmult_all_scores.1} parent=0 // pred_fallthru
    _
  // Predicated region
  $region6: #{distmult_all_scores.1} parent=0 // pred_check
    _
  $region7: #{distmult_all_scores.1} parent=0 // pred_check_branch
    %10 = sbr.rel (0) target = $region9
  $region8: #{distmult_all_scores.1} parent=0 // pred_region
    _
  $region9: #{distmult_all_scores.1} parent=0 // pred_fallthru
    _
  %v12 = vld [vmem:[%s0] sm:$0xf]
  %v13 = vld [vmem:[%s0 + $0x4] sm:$0xf]
  %v14 = vld [vmem:[%s0 + $0x8] sm:$0xf]
  %v15 = vld [vmem:[%s0 + $0xc] sm:$0xf]
  %v16 = vld [vmem:[%s0 + $0x10] sm:$0xf]
  %v17 = vld [vmem:[%s0 + $0x14] sm:$0xf]
  %v18 = vld [vmem:[%s0 + $0x18] sm:$0xf]
  %v19 = vld [vmem:[%s0 + $0x1c] sm:$0xf]
  %v20 = vld [vmem:[%s0 + $0x20] sm:$0xf]
  %v21 = vld [vmem:[%s0 + $0x24] sm:$0xf]
  %v22 = vld [vmem:[%s0 + $0x28] sm:$0xf]
  %v23 = vld [vmem:[%s0 + $0x2c] sm:$0xf]
  %v24 = vld [vmem:[%s0 + $0x30] sm:$0xf]
  %v25 = vld [vmem:[%s0 + $0x34] sm:$0xf]
  %v26 = vld [vmem:[%s0 + $0x38] sm:$0xf]
  %v27 = vld [vmem:[%s0 + $0x3c] sm:$0xf]
  %v28 = vld [vmem:[%s0 + $0x40] sm:$0xf]
  %v29 = vld [vmem:[%s0 + $0x44] sm:$0xf]
  %v30 = vld [vmem:[%s0 + $0x48] sm:$0xf]
  %v31 = vld [vmem:[%s0 + $0x4c] sm:$0xf]
  %v32 = vld [vmem:[%s0 + $0x50] sm:$0xf]
  %v33 = vld [vmem:[%s0 + $0x54] sm:$0xf]
  %v34 = vld [vmem:[%s0 + $0x58] sm:$0xf]
  %v35 = vld [vmem:[%s0 + $0x5c] sm:$0xf]
  %v36 = vld [vmem:[%s0 + $0x60] sm:$0xf]
  %v37 = vld [vmem:[%s0 + $0x64] sm:$0xf]
  %v38 = vld [vmem:[%s0 + $0x68] sm:$0xf]
  %v39 = vld [vmem:[%s0 + $0x6c] sm:$0xf]
  %v40 = vld [vmem:[%s0 + $0x70] sm:$0xf]
  %v41 = vld [vmem:[%s0 + $0x74] sm:$0xf]
  %v42 = vld [vmem:[%s0 + $0x78] sm:$0xf]
  %v43 = vld [vmem:[%s0 + $0x7c] sm:$0xf]
  %v44 = vld [vmem:[%s1] sm:$0xf]
  %v45 = vld [vmem:[%s1 + $0x4] sm:$0xf]
  %v46 = vld [vmem:[%s1 + $0x8] sm:$0xf]
  %v47 = vld [vmem:[%s1 + $0xc] sm:$0xf]
  %v48 = vld [vmem:[%s1 + $0x10] sm:$0xf]
  %v49 = vld [vmem:[%s1 + $0x14] sm:$0xf]
  %v50 = vld [vmem:[%s1 + $0x18] sm:$0xf]
  %v51 = vld [vmem:[%s1 + $0x1c] sm:$0xf]
  %v52 = vld [vmem:[%s1 + $0x20] sm:$0xf]
  %v53 = vld [vmem:[%s1 + $0x24] sm:$0xf]
  %v54 = vld [vmem:[%s1 + $0x28] sm:$0xf]
  %v55 = vld [vmem:[%s1 + $0x2c] sm:$0xf]
  %v56 = vld [vmem:[%s1 + $0x30] sm:$0xf]
  %v57 = vld [vmem:[%s1 + $0x34] sm:$0xf]
  %v58 = vld [vmem:[%s1 + $0x38] sm:$0xf]
  %v59 = vld [vmem:[%s1 + $0x3c] sm:$0xf]
  %v60 = vld [vmem:[%s1 + $0x40] sm:$0xf]
  %v61 = vld [vmem:[%s1 + $0x44] sm:$0xf]
  %v62 = vld [vmem:[%s1 + $0x48] sm:$0xf]
  %v63 = vld [vmem:[%s1 + $0x4c] sm:$0xf]
  %v64 = vld [vmem:[%s1 + $0x50] sm:$0xf]
  %v65 = vld [vmem:[%s1 + $0x54] sm:$0xf]
  %v66 = vld [vmem:[%s1 + $0x58] sm:$0xf]
  %v67 = vld [vmem:[%s1 + $0x5c] sm:$0xf]
  %v68 = vld [vmem:[%s1 + $0x60] sm:$0xf]
  %v69 = vld [vmem:[%s1 + $0x64] sm:$0xf]
  %v70 = vld [vmem:[%s1 + $0x68] sm:$0xf]
  %v71 = vld [vmem:[%s1 + $0x6c] sm:$0xf]
  %v72 = vld [vmem:[%s1 + $0x70] sm:$0xf]
  %v73 = vld [vmem:[%s1 + $0x74] sm:$0xf]
  %v74 = vld [vmem:[%s1 + $0x78] sm:$0xf]
  %v75 = vld [vmem:[%s1 + $0x7c] sm:$0xf]
  %v76 = vld [vmem:[%s1 + $0x80] sm:$0xf]
  %v77 = vld [vmem:[%s1 + $0x84] sm:$0xf]
  %v78 = vld [vmem:[%s1 + $0x88] sm:$0xf]
  %v79 = vld [vmem:[%s1 + $0x8c] sm:$0xf]
  %v80 = vld [vmem:[%s1 + $0x90] sm:$0xf]
  %v81 = vld [vmem:[%s1 + $0x94] sm:$0xf]
  %v82 = vld [vmem:[%s1 + $0x98] sm:$0xf]
  %v83 = vld [vmem:[%s1 + $0x9c] sm:$0xf]
  %v84 = vld [vmem:[%s1 + $0xa0] sm:$0xf]
  %v85 = vld [vmem:[%s1 + $0xa4] sm:$0xf]
  %v86 = vld [vmem:[%s1 + $0xa8] sm:$0xf]
  %v87 = vld [vmem:[%s1 + $0xac] sm:$0xf]
  %v88 = vld [vmem:[%s1 + $0xb0] sm:$0xf]
  %v89 = vld [vmem:[%s1 + $0xb4] sm:$0xf]
  %v90 = vld [vmem:[%s1 + $0xb8] sm:$0xf]
  %v91 = vld [vmem:[%s1 + $0xbc] sm:$0xf]
  %v92 = vld [vmem:[%s1 + $0xc0] sm:$0xf]
  %v93 = vld [vmem:[%s1 + $0xc4] sm:$0xf]
  %v94 = vld [vmem:[%s1 + $0xc8] sm:$0xf]
  %v95 = vld [vmem:[%s1 + $0xcc] sm:$0xf]
  %v96 = vld [vmem:[%s1 + $0xd0] sm:$0xf]
  %v97 = vld [vmem:[%s1 + $0xd4] sm:$0xf]
  %v98 = vld [vmem:[%s1 + $0xd8] sm:$0xf]
  %v99 = vld [vmem:[%s1 + $0xdc] sm:$0xf]
  %v100 = vld [vmem:[%s1 + $0xe0] sm:$0xf]
  %v101 = vld [vmem:[%s1 + $0xe4] sm:$0xf]
  %v102 = vld [vmem:[%s1 + $0xe8] sm:$0xf]
  %v103 = vld [vmem:[%s1 + $0xec] sm:$0xf]
  %v104 = vld [vmem:[%s1 + $0xf0] sm:$0xf]
  %v105 = vld [vmem:[%s1 + $0xf4] sm:$0xf]
  %v106 = vld [vmem:[%s1 + $0xf8] sm:$0xf]
  %v107 = vld [vmem:[%s1 + $0xfc] sm:$0xf]
  %v108 = vld [vmem:[%s1 + $0x100] sm:$0xf]
  %v109 = vld [vmem:[%s1 + $0x104] sm:$0xf]
  %v110 = vld [vmem:[%s1 + $0x108] sm:$0xf]
  %v111 = vld [vmem:[%s1 + $0x10c] sm:$0xf]
  %v112 = vld [vmem:[%s1 + $0x110] sm:$0xf]
  %v113 = vld [vmem:[%s1 + $0x114] sm:$0xf]
  %v114 = vld [vmem:[%s1 + $0x118] sm:$0xf]
  %v115 = vld [vmem:[%s1 + $0x11c] sm:$0xf]
  %v116 = vld [vmem:[%s1 + $0x120] sm:$0xf]
  %v117 = vld [vmem:[%s1 + $0x124] sm:$0xf]
  %v118 = vld [vmem:[%s1 + $0x128] sm:$0xf]
  %v119 = vld [vmem:[%s1 + $0x12c] sm:$0xf]
  %v120 = vld [vmem:[%s1 + $0x130] sm:$0xf]
  %v121 = vld [vmem:[%s1 + $0x134] sm:$0xf]
  %v122 = vld [vmem:[%s1 + $0x138] sm:$0xf]
  %v123 = vld [vmem:[%s1 + $0x13c] sm:$0xf]
  %v124 = vld [vmem:[%s1 + $0x140] sm:$0xf]
  %v125 = vld [vmem:[%s1 + $0x144] sm:$0xf]
  %v126 = vld [vmem:[%s1 + $0x148] sm:$0xf]
  %v127 = vld [vmem:[%s1 + $0x14c] sm:$0xf]
  %v128 = vld [vmem:[%s1 + $0x150] sm:$0xf]
  %v129 = vld [vmem:[%s1 + $0x154] sm:$0xf]
  %v130 = vld [vmem:[%s1 + $0x158] sm:$0xf]
  %v131 = vld [vmem:[%s1 + $0x15c] sm:$0xf]
  %v132 = vld [vmem:[%s1 + $0x160] sm:$0xf]
  %v133 = vld [vmem:[%s1 + $0x164] sm:$0xf]
  %v134 = vld [vmem:[%s1 + $0x168] sm:$0xf]
  %v135 = vld [vmem:[%s1 + $0x16c] sm:$0xf]
  %v136 = vld [vmem:[%s1 + $0x170] sm:$0xf]
  %v137 = vld [vmem:[%s1 + $0x174] sm:$0xf]
  %v138 = vld [vmem:[%s1 + $0x178] sm:$0xf]
  %v139 = vld [vmem:[%s1 + $0x17c] sm:$0xf]
  %v140 = vld [vmem:[%s1 + $0x180] sm:$0xf]
  %v141 = vld [vmem:[%s1 + $0x184] sm:$0xf]
  %v142 = vld [vmem:[%s1 + $0x188] sm:$0xf]
  %v143 = vld [vmem:[%s1 + $0x18c] sm:$0xf]
  %v144 = vld [vmem:[%s1 + $0x190] sm:$0xf]
  %v145 = vld [vmem:[%s1 + $0x194] sm:$0xf]
  %v146 = vld [vmem:[%s1 + $0x198] sm:$0xf]
  %v147 = vld [vmem:[%s1 + $0x19c] sm:$0xf]
  %v148 = vld [vmem:[%s1 + $0x1a0] sm:$0xf]
  %v149 = vld [vmem:[%s1 + $0x1a4] sm:$0xf]
  %v150 = vld [vmem:[%s1 + $0x1a8] sm:$0xf]
  %v151 = vld [vmem:[%s1 + $0x1ac] sm:$0xf]
  %v152 = vld [vmem:[%s1 + $0x1b0] sm:$0xf]
  %v153 = vld [vmem:[%s1 + $0x1b4] sm:$0xf]
  %v154 = vld [vmem:[%s1 + $0x1b8] sm:$0xf]
  %v155 = vld [vmem:[%s1 + $0x1bc] sm:$0xf]
  %v156 = vld [vmem:[%s1 + $0x1c0] sm:$0xf]
  %v157 = vld [vmem:[%s1 + $0x1c4] sm:$0xf]
  %v158 = vld [vmem:[%s1 + $0x1c8] sm:$0xf]
  %v159 = vld [vmem:[%s1 + $0x1cc] sm:$0xf]
  %v160 = vld [vmem:[%s1 + $0x1d0] sm:$0xf]
  %v161 = vld [vmem:[%s1 + $0x1d4] sm:$0xf]
  %v162 = vld [vmem:[%s1 + $0x1d8] sm:$0xf]
  %v163 = vld [vmem:[%s1 + $0x1dc] sm:$0xf]
  %v164 = vld [vmem:[%s1 + $0x1e0] sm:$0xf]
  %v165 = vld [vmem:[%s1 + $0x1e4] sm:$0xf]
  %v166 = vld [vmem:[%s1 + $0x1e8] sm:$0xf]
  %v167 = vld [vmem:[%s1 + $0x1ec] sm:$0xf]
  %v168 = vld [vmem:[%s1 + $0x1f0] sm:$0xf]
  %v169 = vld [vmem:[%s1 + $0x1f4] sm:$0xf]
  %v170 = vld [vmem:[%s1 + $0x1f8] sm:$0xf]
  %v171 = vld [vmem:[%s1 + $0x1fc] sm:$0xf]
  %v204 = vunpack.c.l.b16 %v12
  %v205 = vunpack.c.l.b16 %v13
  %v206 = vunpack.c.l.b16 %v14
  %v207 = vunpack.c.l.b16 %v15
  %v208 = vunpack.c.l.b16 %v16
  %v209 = vunpack.c.l.b16 %v17
  %v210 = vunpack.c.l.b16 %v18
  %v211 = vunpack.c.l.b16 %v19
  %v212 = vunpack.c.l.b16 %v20
  %v213 = vunpack.c.l.b16 %v21
  %v214 = vunpack.c.l.b16 %v22
  %v215 = vunpack.c.l.b16 %v23
  %v216 = vunpack.c.l.b16 %v24
  %v217 = vunpack.c.l.b16 %v25
  %v218 = vunpack.c.l.b16 %v26
  %v219 = vunpack.c.l.b16 %v27
  %v220 = vunpack.c.l.b16 %v28
  %v221 = vunpack.c.l.b16 %v29
  %v222 = vunpack.c.l.b16 %v30
  %v223 = vunpack.c.l.b16 %v31
  %v224 = vunpack.c.l.b16 %v32
  %v225 = vunpack.c.l.b16 %v33
  %v226 = vunpack.c.l.b16 %v34
  %v227 = vunpack.c.l.b16 %v35
  %v228 = vunpack.c.l.b16 %v36
  %v229 = vunpack.c.l.b16 %v37
  %v230 = vunpack.c.l.b16 %v38
  %v231 = vunpack.c.l.b16 %v39
  %v232 = vunpack.c.l.b16 %v40
  %v233 = vunpack.c.l.b16 %v41
  %v234 = vunpack.c.l.b16 %v42
  %v235 = vunpack.c.l.b16 %v43
  %v236 = vpack.c.b16 %v205, %v204
  %v237 = vpack.c.b16 %v207, %v206
  %v238 = vpack.c.b16 %v209, %v208
  %v239 = vpack.c.b16 %v211, %v210
  %v240 = vpack.c.b16 %v213, %v212
  %v241 = vpack.c.b16 %v215, %v214
  %v242 = vpack.c.b16 %v217, %v216
  %v243 = vpack.c.b16 %v219, %v218
  %v244 = vpack.c.b16 %v221, %v220
  %v245 = vpack.c.b16 %v223, %v222
  %v246 = vpack.c.b16 %v225, %v224
  %v247 = vpack.c.b16 %v227, %v226
  %v248 = vpack.c.b16 %v229, %v228
  %v249 = vpack.c.b16 %v231, %v230
  %v250 = vpack.c.b16 %v233, %v232
  %v251 = vpack.c.b16 %v235, %v234
  %v396 = vunpack.c.l.b16 %v44
  %v397 = vunpack.c.l.b16 %v45
  %v398 = vunpack.c.l.b16 %v46
  %v399 = vunpack.c.l.b16 %v47
  %v400 = vunpack.c.l.b16 %v48
  %v401 = vunpack.c.l.b16 %v49
  %v402 = vunpack.c.l.b16 %v50
  %v403 = vunpack.c.l.b16 %v51
  %v404 = vunpack.c.l.b16 %v52
  %v405 = vunpack.c.l.b16 %v53
  %v406 = vunpack.c.l.b16 %v54
  %v407 = vunpack.c.l.b16 %v55
  %v408 = vunpack.c.l.b16 %v56
  %v409 = vunpack.c.l.b16 %v57
  %v410 = vunpack.c.l.b16 %v58
  %v411 = vunpack.c.l.b16 %v59
  %v412 = vunpack.c.l.b16 %v60
  %v413 = vunpack.c.l.b16 %v61
  %v414 = vunpack.c.l.b16 %v62
  %v415 = vunpack.c.l.b16 %v63
  %v416 = vunpack.c.l.b16 %v64
  %v417 = vunpack.c.l.b16 %v65
  %v418 = vunpack.c.l.b16 %v66
  %v419 = vunpack.c.l.b16 %v67
  %v420 = vunpack.c.l.b16 %v68
  %v421 = vunpack.c.l.b16 %v69
  %v422 = vunpack.c.l.b16 %v70
  %v423 = vunpack.c.l.b16 %v71
  %v424 = vunpack.c.l.b16 %v72
  %v425 = vunpack.c.l.b16 %v73
  %v426 = vunpack.c.l.b16 %v74
  %v427 = vunpack.c.l.b16 %v75
  %v428 = vunpack.c.l.b16 %v76
  %v429 = vunpack.c.l.b16 %v77
  %v430 = vunpack.c.l.b16 %v78
  %v431 = vunpack.c.l.b16 %v79
  %v432 = vunpack.c.l.b16 %v80
  %v433 = vunpack.c.l.b16 %v81
  %v434 = vunpack.c.l.b16 %v82
  %v435 = vunpack.c.l.b16 %v83
  %v436 = vunpack.c.l.b16 %v84
  %v437 = vunpack.c.l.b16 %v85
  %v438 = vunpack.c.l.b16 %v86
  %v439 = vunpack.c.l.b16 %v87
  %v440 = vunpack.c.l.b16 %v88
  %v441 = vunpack.c.l.b16 %v89
  %v442 = vunpack.c.l.b16 %v90
  %v443 = vunpack.c.l.b16 %v91
  %v444 = vunpack.c.l.b16 %v92
  %v445 = vunpack.c.l.b16 %v93
  %v446 = vunpack.c.l.b16 %v94
  %v447 = vunpack.c.l.b16 %v95
  %v448 = vunpack.c.l.b16 %v96
  %v449 = vunpack.c.l.b16 %v97
  %v450 = vunpack.c.l.b16 %v98
  %v451 = vunpack.c.l.b16 %v99
  %v452 = vunpack.c.l.b16 %v100
  %v453 = vunpack.c.l.b16 %v101
  %v454 = vunpack.c.l.b16 %v102
  %v455 = vunpack.c.l.b16 %v103
  %v456 = vunpack.c.l.b16 %v104
  %v457 = vunpack.c.l.b16 %v105
  %v458 = vunpack.c.l.b16 %v106
  %v459 = vunpack.c.l.b16 %v107
  %v460 = vunpack.c.l.b16 %v108
  %v461 = vunpack.c.l.b16 %v109
  %v462 = vunpack.c.l.b16 %v110
  %v463 = vunpack.c.l.b16 %v111
  %v464 = vunpack.c.l.b16 %v112
  %v465 = vunpack.c.l.b16 %v113
  %v466 = vunpack.c.l.b16 %v114
  %v467 = vunpack.c.l.b16 %v115
  %v468 = vunpack.c.l.b16 %v116
  %v469 = vunpack.c.l.b16 %v117
  %v470 = vunpack.c.l.b16 %v118
  %v471 = vunpack.c.l.b16 %v119
  %v472 = vunpack.c.l.b16 %v120
  %v473 = vunpack.c.l.b16 %v121
  %v474 = vunpack.c.l.b16 %v122
  %v475 = vunpack.c.l.b16 %v123
  %v476 = vunpack.c.l.b16 %v124
  %v477 = vunpack.c.l.b16 %v125
  %v478 = vunpack.c.l.b16 %v126
  %v479 = vunpack.c.l.b16 %v127
  %v480 = vunpack.c.l.b16 %v128
  %v481 = vunpack.c.l.b16 %v129
  %v482 = vunpack.c.l.b16 %v130
  %v483 = vunpack.c.l.b16 %v131
  %v484 = vunpack.c.l.b16 %v132
  %v485 = vunpack.c.l.b16 %v133
  %v486 = vunpack.c.l.b16 %v134
  %v487 = vunpack.c.l.b16 %v135
  %v488 = vunpack.c.l.b16 %v136
  %v489 = vunpack.c.l.b16 %v137
  %v490 = vunpack.c.l.b16 %v138
  %v491 = vunpack.c.l.b16 %v139
  %v492 = vunpack.c.l.b16 %v140
  %v493 = vunpack.c.l.b16 %v141
  %v494 = vunpack.c.l.b16 %v142
  %v495 = vunpack.c.l.b16 %v143
  %v496 = vunpack.c.l.b16 %v144
  %v497 = vunpack.c.l.b16 %v145
  %v498 = vunpack.c.l.b16 %v146
  %v499 = vunpack.c.l.b16 %v147
  %v500 = vunpack.c.l.b16 %v148
  %v501 = vunpack.c.l.b16 %v149
  %v502 = vunpack.c.l.b16 %v150
  %v503 = vunpack.c.l.b16 %v151
  %v504 = vunpack.c.l.b16 %v152
  %v505 = vunpack.c.l.b16 %v153
  %v506 = vunpack.c.l.b16 %v154
  %v507 = vunpack.c.l.b16 %v155
  %v508 = vunpack.c.l.b16 %v156
  %v509 = vunpack.c.l.b16 %v157
  %v510 = vunpack.c.l.b16 %v158
  %v511 = vunpack.c.l.b16 %v159
  %v512 = vunpack.c.l.b16 %v160
  %v513 = vunpack.c.l.b16 %v161
  %v514 = vunpack.c.l.b16 %v162
  %v515 = vunpack.c.l.b16 %v163
  %v516 = vunpack.c.l.b16 %v164
  %v517 = vunpack.c.l.b16 %v165
  %v518 = vunpack.c.l.b16 %v166
  %v519 = vunpack.c.l.b16 %v167
  %v520 = vunpack.c.l.b16 %v168
  %v521 = vunpack.c.l.b16 %v169
  %v522 = vunpack.c.l.b16 %v170
  %v523 = vunpack.c.l.b16 %v171
  %v524 = vpack.c.b16 %v397, %v396
  %v525 = vpack.c.b16 %v399, %v398
  %v526 = vpack.c.b16 %v401, %v400
  %v527 = vpack.c.b16 %v403, %v402
  %v528 = vpack.c.b16 %v405, %v404
  %v529 = vpack.c.b16 %v407, %v406
  %v530 = vpack.c.b16 %v409, %v408
  %v531 = vpack.c.b16 %v411, %v410
  %v532 = vpack.c.b16 %v413, %v412
  %v533 = vpack.c.b16 %v415, %v414
  %v534 = vpack.c.b16 %v417, %v416
  %v535 = vpack.c.b16 %v419, %v418
  %v536 = vpack.c.b16 %v421, %v420
  %v537 = vpack.c.b16 %v423, %v422
  %v538 = vpack.c.b16 %v425, %v424
  %v539 = vpack.c.b16 %v427, %v426
  %v540 = vpack.c.b16 %v429, %v428
  %v541 = vpack.c.b16 %v431, %v430
  %v542 = vpack.c.b16 %v433, %v432
  %v543 = vpack.c.b16 %v435, %v434
  %v544 = vpack.c.b16 %v437, %v436
  %v545 = vpack.c.b16 %v439, %v438
  %v546 = vpack.c.b16 %v441, %v440
  %v547 = vpack.c.b16 %v443, %v442
  %v548 = vpack.c.b16 %v445, %v444
  %v549 = vpack.c.b16 %v447, %v446
  %v550 = vpack.c.b16 %v449, %v448
  %v551 = vpack.c.b16 %v451, %v450
  %v552 = vpack.c.b16 %v453, %v452
  %v553 = vpack.c.b16 %v455, %v454
  %v554 = vpack.c.b16 %v457, %v456
  %v555 = vpack.c.b16 %v459, %v458
  %v556 = vpack.c.b16 %v461, %v460
  %v557 = vpack.c.b16 %v463, %v462
  %v558 = vpack.c.b16 %v465, %v464
  %v559 = vpack.c.b16 %v467, %v466
  %v560 = vpack.c.b16 %v469, %v468
  %v561 = vpack.c.b16 %v471, %v470
  %v562 = vpack.c.b16 %v473, %v472
  %v563 = vpack.c.b16 %v475, %v474
  %v564 = vpack.c.b16 %v477, %v476
  %v565 = vpack.c.b16 %v479, %v478
  %v566 = vpack.c.b16 %v481, %v480
  %v567 = vpack.c.b16 %v483, %v482
  %v568 = vpack.c.b16 %v485, %v484
  %v569 = vpack.c.b16 %v487, %v486
  %v570 = vpack.c.b16 %v489, %v488
  %v571 = vpack.c.b16 %v491, %v490
  %v572 = vpack.c.b16 %v493, %v492
  %v573 = vpack.c.b16 %v495, %v494
  %v574 = vpack.c.b16 %v497, %v496
  %v575 = vpack.c.b16 %v499, %v498
  %v576 = vpack.c.b16 %v501, %v500
  %v577 = vpack.c.b16 %v503, %v502
  %v578 = vpack.c.b16 %v505, %v504
  %v579 = vpack.c.b16 %v507, %v506
  %v580 = vpack.c.b16 %v509, %v508
  %v581 = vpack.c.b16 %v511, %v510
  %v582 = vpack.c.b16 %v513, %v512
  %v583 = vpack.c.b16 %v515, %v514
  %v584 = vpack.c.b16 %v517, %v516
  %v585 = vpack.c.b16 %v519, %v518
  %v586 = vpack.c.b16 %v521, %v520
  %v587 = vpack.c.b16 %v523, %v522
  %652 = vmatprep.subr.bf16.mxu0 0
  %653 = vmatpush1.bf16.xpose.msra.mxu0 %v524
  %654 = vmatprep.subr.bf16.mxu0 0
  %655 = vmatpush1.bf16.xpose.msra.mxu0 %v525
  %656 = vmatprep.subr.bf16.mxu0 0
  %657 = vmatpush1.bf16.xpose.msra.mxu0 %v526
  %658 = vmatprep.subr.bf16.mxu0 0
  %659 = vmatpush1.bf16.xpose.msra.mxu0 %v527
  %660 = vmatprep.subr.bf16.mxu0 0
  %661 = vmatpush1.bf16.xpose.msra.mxu0 %v528
  %662 = vmatprep.subr.bf16.mxu0 0
  %663 = vmatpush1.bf16.xpose.msra.mxu0 %v529
  %664 = vmatprep.subr.bf16.mxu0 0
  %665 = vmatpush1.bf16.xpose.msra.mxu0 %v530
  %666 = vmatprep.subr.bf16.mxu0 0
  %667 = vmatpush1.bf16.xpose.msra.mxu0 %v531
  %668 = vmatprep.subr.bf16.mxu0 0
  %669 = vmatpush1.bf16.xpose.msra.mxu0 %v532
  %670 = vmatprep.subr.bf16.mxu0 0
  %671 = vmatpush1.bf16.xpose.msra.mxu0 %v533
  %672 = vmatprep.subr.bf16.mxu0 0
  %673 = vmatpush1.bf16.xpose.msra.mxu0 %v534
  %674 = vmatprep.subr.bf16.mxu0 0
  %675 = vmatpush1.bf16.xpose.msra.mxu0 %v535
  %676 = vmatprep.subr.bf16.mxu0 0
  %677 = vmatpush1.bf16.xpose.msra.mxu0 %v536
  %678 = vmatprep.subr.bf16.mxu0 0
  %679 = vmatpush1.bf16.xpose.msra.mxu0 %v537
  %680 = vmatprep.subr.bf16.mxu0 0
  %681 = vmatpush1.bf16.xpose.msra.mxu0 %v538
  %682 = vmatprep.subr.bf16.mxu0 0
  %683 = vmatpush1.bf16.xpose.msra.mxu0 %v539
  %684 = vmatprep.mubr.bf16.mxu0 0
  %685 = vmatmul.mubr.bf16.gmra.mrb[0].mxu0 %v236
  %v686 = vpop.f32.mrb[0].mxu0
  %v687 = vadd.f32 0.0, %v686
  %v688 = vpop.f32.mrb[0].mxu0
  %v689 = vadd.f32 0.0, %v688
  %v690 = vpop.f32.mrb[0].mxu0
  %v691 = vadd.f32 0.0, %v690
  %v692 = vpop.f32.mrb[0].mxu0
  %v693 = vadd.f32 0.0, %v692
  %694 = vmatprep.mubr.bf16.mxu0 0
  %695 = vmatmul.mubr.bf16.gmra.mrb[0].mxu0 %v237
  %v696 = vpop.f32.mrb[0].mxu0
  %v697 = vadd.f32 0.0, %v696
  %v698 = vpop.f32.mrb[0].mxu0
  %v699 = vadd.f32 0.0, %v698
  %v700 = vpop.f32.mrb[0].mxu0
  %v701 = vadd.f32 0.0, %v700
  %v702 = vpop.f32.mrb[0].mxu0
  %v703 = vadd.f32 0.0, %v702
  %704 = vmatprep.mubr.bf16.mxu0 0
  %705 = vmatmul.mubr.bf16.gmra.mrb[0].mxu0 %v238
  %v706 = vpop.f32.mrb[0].mxu0
  %v707 = vadd.f32 0.0, %v706
  %v708 = vpop.f32.mrb[0].mxu0
  %v709 = vadd.f32 0.0, %v708
  %v710 = vpop.f32.mrb[0].mxu0
  %v711 = vadd.f32 0.0, %v710
  %v712 = vpop.f32.mrb[0].mxu0
  %v713 = vadd.f32 0.0, %v712
  %714 = vmatprep.mubr.bf16.mxu0 0
  %715 = vmatmul.mubr.bf16.gmra.mrb[0].mxu0 %v239
  %v716 = vpop.f32.mrb[0].mxu0
  %v717 = vadd.f32 0.0, %v716
  %v718 = vpop.f32.mrb[0].mxu0
  %v719 = vadd.f32 0.0, %v718
  %v720 = vpop.f32.mrb[0].mxu0
  %v721 = vadd.f32 0.0, %v720
  %v722 = vpop.f32.mrb[0].mxu0
  %v723 = vadd.f32 0.0, %v722
  %724 = vmatprep.mubr.bf16.mxu0 0
  %725 = vmatmul.mubr.bf16.gmra.mrb[0].mxu0 %v240
  %v726 = vpop.f32.mrb[0].mxu0
  %v727 = vadd.f32 0.0, %v726
  %v728 = vpop.f32.mrb[0].mxu0
  %v729 = vadd.f32 0.0, %v728
  %v730 = vpop.f32.mrb[0].mxu0
  %v731 = vadd.f32 0.0, %v730
  %v732 = vpop.f32.mrb[0].mxu0
  %v733 = vadd.f32 0.0, %v732
  %734 = vmatprep.mubr.bf16.mxu0 0
  %735 = vmatmul.mubr.bf16.gmra.mrb[0].mxu0 %v241
  %v736 = vpop.f32.mrb[0].mxu0
  %v737 = vadd.f32 0.0, %v736
  %v738 = vpop.f32.mrb[0].mxu0
  %v739 = vadd.f32 0.0, %v738
  %v740 = vpop.f32.mrb[0].mxu0
  %v741 = vadd.f32 0.0, %v740
  %v742 = vpop.f32.mrb[0].mxu0
  %v743 = vadd.f32 0.0, %v742
  %744 = vmatprep.mubr.bf16.mxu0 0
  %745 = vmatmul.mubr.bf16.gmra.mrb[0].mxu0 %v242
  %v746 = vpop.f32.mrb[0].mxu0
  %v747 = vadd.f32 0.0, %v746
  %v748 = vpop.f32.mrb[0].mxu0
  %v749 = vadd.f32 0.0, %v748
  %v750 = vpop.f32.mrb[0].mxu0
  %v751 = vadd.f32 0.0, %v750
  %v752 = vpop.f32.mrb[0].mxu0
  %v753 = vadd.f32 0.0, %v752
  %754 = vmatprep.mubr.bf16.mxu0 0
  %755 = vmatmul.mubr.bf16.gmra.mrb[0].mxu0 %v243
  %v756 = vpop.f32.mrb[0].mxu0
  %v757 = vadd.f32 0.0, %v756
  %v758 = vpop.f32.mrb[0].mxu0
  %v759 = vadd.f32 0.0, %v758
  %v760 = vpop.f32.mrb[0].mxu0
  %v761 = vadd.f32 0.0, %v760
  %v762 = vpop.f32.mrb[0].mxu0
  %v763 = vadd.f32 0.0, %v762
  %764 = vmatprep.mubr.bf16.mxu0 0
  %765 = vmatmul.mubr.bf16.gmra.mrb[0].mxu0 %v244
  %v766 = vpop.f32.mrb[0].mxu0
  %v767 = vadd.f32 0.0, %v766
  %v768 = vpop.f32.mrb[0].mxu0
  %v769 = vadd.f32 0.0, %v768
  %v770 = vpop.f32.mrb[0].mxu0
  %v771 = vadd.f32 0.0, %v770
  %v772 = vpop.f32.mrb[0].mxu0
  %v773 = vadd.f32 0.0, %v772
  %774 = vmatprep.mubr.bf16.mxu0 0
  %775 = vmatmul.mubr.bf16.gmra.mrb[0].mxu0 %v245
  %v776 = vpop.f32.mrb[0].mxu0
  %v777 = vadd.f32 0.0, %v776
  %v778 = vpop.f32.mrb[0].mxu0
  %v779 = vadd.f32 0.0, %v778
  %v780 = vpop.f32.mrb[0].mxu0
  %v781 = vadd.f32 0.0, %v780
  %v782 = vpop.f32.mrb[0].mxu0
  %v783 = vadd.f32 0.0, %v782
  %784 = vmatprep.mubr.bf16.mxu0 0
  %785 = vmatmul.mubr.bf16.gmra.mrb[0].mxu0 %v246
  %v786 = vpop.f32.mrb[0].mxu0
  %v787 = vadd.f32 0.0, %v786
  %v788 = vpop.f32.mrb[0].mxu0
  %v789 = vadd.f32 0.0, %v788
  %v790 = vpop.f32.mrb[0].mxu0
  %v791 = vadd.f32 0.0, %v790
  %v792 = vpop.f32.mrb[0].mxu0
  %v793 = vadd.f32 0.0, %v792
  %794 = vmatprep.mubr.bf16.mxu0 0
  %795 = vmatmul.mubr.bf16.gmra.mrb[0].mxu0 %v247
  %v796 = vpop.f32.mrb[0].mxu0
  %v797 = vadd.f32 0.0, %v796
  %v798 = vpop.f32.mrb[0].mxu0
  %v799 = vadd.f32 0.0, %v798
  %v800 = vpop.f32.mrb[0].mxu0
  %v801 = vadd.f32 0.0, %v800
  %v802 = vpop.f32.mrb[0].mxu0
  %v803 = vadd.f32 0.0, %v802
  %804 = vmatprep.mubr.bf16.mxu0 0
  %805 = vmatmul.mubr.bf16.gmra.mrb[0].mxu0 %v248
  %v806 = vpop.f32.mrb[0].mxu0
  %v807 = vadd.f32 0.0, %v806
  %v808 = vpop.f32.mrb[0].mxu0
  %v809 = vadd.f32 0.0, %v808
  %v810 = vpop.f32.mrb[0].mxu0
  %v811 = vadd.f32 0.0, %v810
  %v812 = vpop.f32.mrb[0].mxu0
  %v813 = vadd.f32 0.0, %v812
  %814 = vmatprep.mubr.bf16.mxu0 0
  %815 = vmatmul.mubr.bf16.gmra.mrb[0].mxu0 %v249
  %v816 = vpop.f32.mrb[0].mxu0
  %v817 = vadd.f32 0.0, %v816
  %v818 = vpop.f32.mrb[0].mxu0
  %v819 = vadd.f32 0.0, %v818
  %v820 = vpop.f32.mrb[0].mxu0
  %v821 = vadd.f32 0.0, %v820
  %v822 = vpop.f32.mrb[0].mxu0
  %v823 = vadd.f32 0.0, %v822
  %824 = vmatprep.mubr.bf16.mxu0 0
  %825 = vmatmul.mubr.bf16.gmra.mrb[0].mxu0 %v250
  %v826 = vpop.f32.mrb[0].mxu0
  %v827 = vadd.f32 0.0, %v826
  %v828 = vpop.f32.mrb[0].mxu0
  %v829 = vadd.f32 0.0, %v828
  %v830 = vpop.f32.mrb[0].mxu0
  %v831 = vadd.f32 0.0, %v830
  %v832 = vpop.f32.mrb[0].mxu0
  %v833 = vadd.f32 0.0, %v832
  %834 = vmatprep.mubr.bf16.mxu0 0
  %835 = vmatmul.mubr.bf16.gmra.mrb[0].mxu0 %v251
  %v836 = vpop.f32.mrb[0].mxu0
  %v837 = vadd.f32 0.0, %v836
  %v838 = vpop.f32.mrb[0].mxu0
  %v839 = vadd.f32 0.0, %v838
  %v840 = vpop.f32.mrb[0].mxu0
  %v841 = vadd.f32 0.0, %v840
  %v842 = vpop.f32.mrb[0].mxu0
  %v843 = vadd.f32 0.0, %v842
  %844 = vdwg.mxu0
  %845 = vmatprep.subr.bf16.mxu0 0
  %846 = vmatpush1.bf16.xpose.msra.mxu0 %v540
  %847 = vmatprep.subr.bf16.mxu0 0
  %848 = vmatpush1.bf16.xpose.msra.mxu0 %v541
  %849 = vmatprep.subr.bf16.mxu0 0
  %850 = vmatpush1.bf16.xpose.msra.mxu0 %v542
  %851 = vmatprep.subr.bf16.mxu0 0
  %852 = vmatpush1.bf16.xpose.msra.mxu0 %v543
  %853 = vmatprep.subr.bf16.mxu0 0
  %854 = vmatpush1.bf16.xpose.msra.mxu0 %v544
  %855 = vmatprep.subr.bf16.mxu0 0
  %856 = vmatpush1.bf16.xpose.msra.mxu0 %v545
  %857 = vmatprep.subr.bf16.mxu0 0
  %858 = vmatpush1.bf16.xpose.msra.mxu0 %v546
  %859 = vmatprep.subr.bf16.mxu0 0
  %860 = vmatpush1.bf16.xpose.msra.mxu0 %v547
  %861 = vmatprep.subr.bf16.mxu0 0
  %862 = vmatpush1.bf16.xpose.msra.mxu0 %v548
  %863 = vmatprep.subr.bf16.mxu0 0
  %864 = vmatpush1.bf16.xpose.msra.mxu0 %v549
  %865 = vmatprep.subr.bf16.mxu0 0
  %866 = vmatpush1.bf16.xpose.msra.mxu0 %v550
  %867 = vmatprep.subr.bf16.mxu0 0
  %868 = vmatpush1.bf16.xpose.msra.mxu0 %v551
  %869 = vmatprep.subr.bf16.mxu0 0
  %870 = vmatpush1.bf16.xpose.msra.mxu0 %v552
  %871 = vmatprep.subr.bf16.mxu0 0
  %872 = vmatpush1.bf16.xpose.msra.mxu0 %v553
  %873 = vmatprep.subr.bf16.mxu0 0
  %874 = vmatpush1.bf16.xpose.msra.mxu0 %v554
  %875 = vmatprep.subr.bf16.mxu0 0
  %876 = vmatpush1.bf16.xpose.msra.mxu0 %v555
  %877 = vmatprep.mubr.bf16.mxu0 0
  %878 = vmatmul.mubr.bf16.gmra.mrb[0].mxu0 %v236
  %v879 = vpop.f32.mrb[0].mxu0
  %v880 = vadd.f32 0.0, %v879
  %v881 = vpop.f32.mrb[0].mxu0
  %v882 = vadd.f32 0.0, %v881
  %v883 = vpop.f32.mrb[0].mxu0
  %v884 = vadd.f32 0.0, %v883
  %v885 = vpop.f32.mrb[0].mxu0
  %v886 = vadd.f32 0.0, %v885
  %887 = vmatprep.mubr.bf16.mxu0 0
  %888 = vmatmul.mubr.bf16.gmra.mrb[0].mxu0 %v237
  %v889 = vpop.f32.mrb[0].mxu0
  %v890 = vadd.f32 0.0, %v889
  %v891 = vpop.f32.mrb[0].mxu0
  %v892 = vadd.f32 0.0, %v891
  %v893 = vpop.f32.mrb[0].mxu0
  %v894 = vadd.f32 0.0, %v893
  %v895 = vpop.f32.mrb[0].mxu0
  %v896 = vadd.f32 0.0, %v895
  %897 = vmatprep.mubr.bf16.mxu0 0
  %898 = vmatmul.mubr.bf16.gmra.mrb[0].mxu0 %v238
  %v899 = vpop.f32.mrb[0].mxu0
  %v900 = vadd.f32 0.0, %v899
  %v901 = vpop.f32.mrb[0].mxu0
  %v902 = vadd.f32 0.0, %v901
  %v903 = vpop.f32.mrb[0].mxu0
  %v904 = vadd.f32 0.0, %v903
  %v905 = vpop.f32.mrb[0].mxu0
  %v906 = vadd.f32 0.0, %v905
  %907 = vmatprep.mubr.bf16.mxu0 0
  %908 = vmatmul.mubr.bf16.gmra.mrb[0].mxu0 %v239
  %v909 = vpop.f32.mrb[0].mxu0
  %v910 = vadd.f32 0.0, %v909
  %v911 = vpop.f32.mrb[0].mxu0
  %v912 = vadd.f32 0.0, %v911
  %v913 = vpop.f32.mrb[0].mxu0
  %v914 = vadd.f32 0.0, %v913
  %v915 = vpop.f32.mrb[0].mxu0
  %v916 = vadd.f32 0.0, %v915
  %917 = vmatprep.mubr.bf16.mxu0 0
  %918 = vmatmul.mubr.bf16.gmra.mrb[0].mxu0 %v240
  %v919 = vpop.f32.mrb[0].mxu0
  %v920 = vadd.f32 0.0, %v919
  %v921 = vpop.f32.mrb[0].mxu0
  %v922 = vadd.f32 0.0, %v921
  %v923 = vpop.f32.mrb[0].mxu0
  %v924 = vadd.f32 0.0, %v923
  %v925 = vpop.f32.mrb[0].mxu0
  %v926 = vadd.f32 0.0, %v925
  %927 = vmatprep.mubr.bf16.mxu0 0
  %928 = vmatmul.mubr.bf16.gmra.mrb[0].mxu0 %v241
  %v929 = vpop.f32.mrb[0].mxu0
  %v930 = vadd.f32 0.0, %v929
  %v931 = vpop.f32.mrb[0].mxu0
  %v932 = vadd.f32 0.0, %v931
  %v933 = vpop.f32.mrb[0].mxu0
  %v934 = vadd.f32 0.0, %v933
  %v935 = vpop.f32.mrb[0].mxu0
  %v936 = vadd.f32 0.0, %v935
  %937 = vmatprep.mubr.bf16.mxu0 0
  %938 = vmatmul.mubr.bf16.gmra.mrb[0].mxu0 %v242
  %v939 = vpop.f32.mrb[0].mxu0
  %v940 = vadd.f32 0.0, %v939
  %v941 = vpop.f32.mrb[0].mxu0
  %v942 = vadd.f32 0.0, %v941
  %v943 = vpop.f32.mrb[0].mxu0
  %v944 = vadd.f32 0.0, %v943
  %v945 = vpop.f32.mrb[0].mxu0
  %v946 = vadd.f32 0.0, %v945
  %947 = vmatprep.mubr.bf16.mxu0 0
  %948 = vmatmul.mubr.bf16.gmra.mrb[0].mxu0 %v243
  %v949 = vpop.f32.mrb[0].mxu0
  %v950 = vadd.f32 0.0, %v949
  %v951 = vpop.f32.mrb[0].mxu0
  %v952 = vadd.f32 0.0, %v951
  %v953 = vpop.f32.mrb[0].mxu0
  %v954 = vadd.f32 0.0, %v953
  %v955 = vpop.f32.mrb[0].mxu0
  %v956 = vadd.f32 0.0, %v955
  %957 = vmatprep.mubr.bf16.mxu0 0
  %958 = vmatmul.mubr.bf16.gmra.mrb[0].mxu0 %v244
  %v959 = vpop.f32.mrb[0].mxu0
  %v960 = vadd.f32 0.0, %v959
  %v961 = vpop.f32.mrb[0].mxu0
  %v962 = vadd.f32 0.0, %v961
  %v963 = vpop.f32.mrb[0].mxu0
  %v964 = vadd.f32 0.0, %v963
  %v965 = vpop.f32.mrb[0].mxu0
  %v966 = vadd.f32 0.0, %v965
  %967 = vmatprep.mubr.bf16.mxu0 0
  %968 = vmatmul.mubr.bf16.gmra.mrb[0].mxu0 %v245
  %v969 = vpop.f32.mrb[0].mxu0
  %v970 = vadd.f32 0.0, %v969
  %v971 = vpop.f32.mrb[0].mxu0
  %v972 = vadd.f32 0.0, %v971
  %v973 = vpop.f32.mrb[0].mxu0
  %v974 = vadd.f32 0.0, %v973
  %v975 = vpop.f32.mrb[0].mxu0
  %v976 = vadd.f32 0.0, %v975
  %977 = vmatprep.mubr.bf16.mxu0 0
  %978 = vmatmul.mubr.bf16.gmra.mrb[0].mxu0 %v246
  %v979 = vpop.f32.mrb[0].mxu0
  %v980 = vadd.f32 0.0, %v979
  %v981 = vpop.f32.mrb[0].mxu0
  %v982 = vadd.f32 0.0, %v981
  %v983 = vpop.f32.mrb[0].mxu0
  %v984 = vadd.f32 0.0, %v983
  %v985 = vpop.f32.mrb[0].mxu0
  %v986 = vadd.f32 0.0, %v985
  %987 = vmatprep.mubr.bf16.mxu0 0
  %988 = vmatmul.mubr.bf16.gmra.mrb[0].mxu0 %v247
  %v989 = vpop.f32.mrb[0].mxu0
  %v990 = vadd.f32 0.0, %v989
  %v991 = vpop.f32.mrb[0].mxu0
  %v992 = vadd.f32 0.0, %v991
  %v993 = vpop.f32.mrb[0].mxu0
  %v994 = vadd.f32 0.0, %v993
  %v995 = vpop.f32.mrb[0].mxu0
  %v996 = vadd.f32 0.0, %v995
  %997 = vmatprep.mubr.bf16.mxu0 0
  %998 = vmatmul.mubr.bf16.gmra.mrb[0].mxu0 %v248
  %v999 = vpop.f32.mrb[0].mxu0
  %v1000 = vadd.f32 0.0, %v999
  %v1001 = vpop.f32.mrb[0].mxu0
  %v1002 = vadd.f32 0.0, %v1001
  %v1003 = vpop.f32.mrb[0].mxu0
  %v1004 = vadd.f32 0.0, %v1003
  %v1005 = vpop.f32.mrb[0].mxu0
  %v1006 = vadd.f32 0.0, %v1005
  %1007 = vmatprep.mubr.bf16.mxu0 0
  %1008 = vmatmul.mubr.bf16.gmra.mrb[0].mxu0 %v249
  %v1009 = vpop.f32.mrb[0].mxu0
  %v1010 = vadd.f32 0.0, %v1009
  %v1011 = vpop.f32.mrb[0].mxu0
  %v1012 = vadd.f32 0.0, %v1011
  %v1013 = vpop.f32.mrb[0].mxu0
  %v1014 = vadd.f32 0.0, %v1013
  %v1015 = vpop.f32.mrb[0].mxu0
  %v1016 = vadd.f32 0.0, %v1015
  %1017 = vmatprep.mubr.bf16.mxu0 0
  %1018 = vmatmul.mubr.bf16.gmra.mrb[0].mxu0 %v250
  %v1019 = vpop.f32.mrb[0].mxu0
  %v1020 = vadd.f32 0.0, %v1019
  %v1021 = vpop.f32.mrb[0].mxu0
  %v1022 = vadd.f32 0.0, %v1021
  %v1023 = vpop.f32.mrb[0].mxu0
  %v1024 = vadd.f32 0.0, %v1023
  %v1025 = vpop.f32.mrb[0].mxu0
  %v1026 = vadd.f32 0.0, %v1025
  %1027 = vmatprep.mubr.bf16.mxu0 0
  %1028 = vmatmul.mubr.bf16.gmra.mrb[0].mxu0 %v251
  %v1029 = vpop.f32.mrb[0].mxu0
  %v1030 = vadd.f32 0.0, %v1029
  %v1031 = vpop.f32.mrb[0].mxu0
  %v1032 = vadd.f32 0.0, %v1031
  %v1033 = vpop.f32.mrb[0].mxu0
  %v1034 = vadd.f32 0.0, %v1033
  %v1035 = vpop.f32.mrb[0].mxu0
  %v1036 = vadd.f32 0.0, %v1035
  %1037 = vdwg.mxu0
  %1038 = vmatprep.subr.bf16.mxu0 0
  %1039 = vmatpush1.bf16.xpose.msra.mxu0 %v556
  %1040 = vmatprep.subr.bf16.mxu0 0
  %1041 = vmatpush1.bf16.xpose.msra.mxu0 %v557
  %1042 = vmatprep.subr.bf16.mxu0 0
  %1043 = vmatpush1.bf16.xpose.msra.mxu0 %v558
  %1044 = vmatprep.subr.bf16.mxu0 0
  %1045 = vmatpush1.bf16.xpose.msra.mxu0 %v559
  %1046 = vmatprep.subr.bf16.mxu0 0
  %1047 = vmatpush1.bf16.xpose.msra.mxu0 %v560
  %1048 = vmatprep.subr.bf16.mxu0 0
  %1049 = vmatpush1.bf16.xpose.msra.mxu0 %v561
  %1050 = vmatprep.subr.bf16.mxu0 0
  %1051 = vmatpush1.bf16.xpose.msra.mxu0 %v562
  %1052 = vmatprep.subr.bf16.mxu0 0
  %1053 = vmatpush1.bf16.xpose.msra.mxu0 %v563
  %1054 = vmatprep.subr.bf16.mxu0 0
  %1055 = vmatpush1.bf16.xpose.msra.mxu0 %v564
  %1056 = vmatprep.subr.bf16.mxu0 0
  %1057 = vmatpush1.bf16.xpose.msra.mxu0 %v565
  %1058 = vmatprep.subr.bf16.mxu0 0
  %1059 = vmatpush1.bf16.xpose.msra.mxu0 %v566
  %1060 = vmatprep.subr.bf16.mxu0 0
  %1061 = vmatpush1.bf16.xpose.msra.mxu0 %v567
  %1062 = vmatprep.subr.bf16.mxu0 0
  %1063 = vmatpush1.bf16.xpose.msra.mxu0 %v568
  %1064 = vmatprep.subr.bf16.mxu0 0
  %1065 = vmatpush1.bf16.xpose.msra.mxu0 %v569
  %1066 = vmatprep.subr.bf16.mxu0 0
  %1067 = vmatpush1.bf16.xpose.msra.mxu0 %v570
  %1068 = vmatprep.subr.bf16.mxu0 0
  %1069 = vmatpush1.bf16.xpose.msra.mxu0 %v571
  %1070 = vmatprep.mubr.bf16.mxu0 0
  %1071 = vmatmul.mubr.bf16.gmra.mrb[0].mxu0 %v236
  %v1072 = vpop.f32.mrb[0].mxu0
  %v1073 = vadd.f32 0.0, %v1072
  %v1074 = vpop.f32.mrb[0].mxu0
  %v1075 = vadd.f32 0.0, %v1074
  %v1076 = vpop.f32.mrb[0].mxu0
  %v1077 = vadd.f32 0.0, %v1076
  %v1078 = vpop.f32.mrb[0].mxu0
  %v1079 = vadd.f32 0.0, %v1078
  %1080 = vmatprep.mubr.bf16.mxu0 0
  %1081 = vmatmul.mubr.bf16.gmra.mrb[0].mxu0 %v237
  %v1082 = vpop.f32.mrb[0].mxu0
  %v1083 = vadd.f32 0.0, %v1082
  %v1084 = vpop.f32.mrb[0].mxu0
  %v1085 = vadd.f32 0.0, %v1084
  %v1086 = vpop.f32.mrb[0].mxu0
  %v1087 = vadd.f32 0.0, %v1086
  %v1088 = vpop.f32.mrb[0].mxu0
  %v1089 = vadd.f32 0.0, %v1088
  %1090 = vmatprep.mubr.bf16.mxu0 0
  %1091 = vmatmul.mubr.bf16.gmra.mrb[0].mxu0 %v238
  %v1092 = vpop.f32.mrb[0].mxu0
  %v1093 = vadd.f32 0.0, %v1092
  %v1094 = vpop.f32.mrb[0].mxu0
  %v1095 = vadd.f32 0.0, %v1094
  %v1096 = vpop.f32.mrb[0].mxu0
  %v1097 = vadd.f32 0.0, %v1096
  %v1098 = vpop.f32.mrb[0].mxu0
  %v1099 = vadd.f32 0.0, %v1098
  %1100 = vmatprep.mubr.bf16.mxu0 0
  %1101 = vmatmul.mubr.bf16.gmra.mrb[0].mxu0 %v239
  %v1102 = vpop.f32.mrb[0].mxu0
  %v1103 = vadd.f32 0.0, %v1102
  %v1104 = vpop.f32.mrb[0].mxu0
  %v1105 = vadd.f32 0.0, %v1104
  %v1106 = vpop.f32.mrb[0].mxu0
  %v1107 = vadd.f32 0.0, %v1106
  %v1108 = vpop.f32.mrb[0].mxu0
  %v1109 = vadd.f32 0.0, %v1108
  %1110 = vmatprep.mubr.bf16.mxu0 0
  %1111 = vmatmul.mubr.bf16.gmra.mrb[0].mxu0 %v240
  %v1112 = vpop.f32.mrb[0].mxu0
  %v1113 = vadd.f32 0.0, %v1112
  %v1114 = vpop.f32.mrb[0].mxu0
  %v1115 = vadd.f32 0.0, %v1114
  %v1116 = vpop.f32.mrb[0].mxu0
  %v1117 = vadd.f32 0.0, %v1116
  %v1118 = vpop.f32.mrb[0].mxu0
  %v1119 = vadd.f32 0.0, %v1118
  %1120 = vmatprep.mubr.bf16.mxu0 0
  %1121 = vmatmul.mubr.bf16.gmra.mrb[0].mxu0 %v241
  %v1122 = vpop.f32.mrb[0].mxu0
  %v1123 = vadd.f32 0.0, %v1122
  %v1124 = vpop.f32.mrb[0].mxu0
  %v1125 = vadd.f32 0.0, %v1124
  %v1126 = vpop.f32.mrb[0].mxu0
  %v1127 = vadd.f32 0.0, %v1126
  %v1128 = vpop.f32.mrb[0].mxu0
  %v1129 = vadd.f32 0.0, %v1128
  %1130 = vmatprep.mubr.bf16.mxu0 0
  %1131 = vmatmul.mubr.bf16.gmra.mrb[0].mxu0 %v242
  %v1132 = vpop.f32.mrb[0].mxu0
  %v1133 = vadd.f32 0.0, %v1132
  %v1134 = vpop.f32.mrb[0].mxu0
  %v1135 = vadd.f32 0.0, %v1134
  %v1136 = vpop.f32.mrb[0].mxu0
  %v1137 = vadd.f32 0.0, %v1136
  %v1138 = vpop.f32.mrb[0].mxu0
  %v1139 = vadd.f32 0.0, %v1138
  %1140 = vmatprep.mubr.bf16.mxu0 0
  %1141 = vmatmul.mubr.bf16.gmra.mrb[0].mxu0 %v243
  %v1142 = vpop.f32.mrb[0].mxu0
  %v1143 = vadd.f32 0.0, %v1142
  %v1144 = vpop.f32.mrb[0].mxu0
  %v1145 = vadd.f32 0.0, %v1144
  %v1146 = vpop.f32.mrb[0].mxu0
  %v1147 = vadd.f32 0.0, %v1146
  %v1148 = vpop.f32.mrb[0].mxu0
  %v1149 = vadd.f32 0.0, %v1148
  %1150 = vmatprep.mubr.bf16.mxu0 0
  %1151 = vmatmul.mubr.bf16.gmra.mrb[0].mxu0 %v244
  %v1152 = vpop.f32.mrb[0].mxu0
  %v1153 = vadd.f32 0.0, %v1152
  %v1154 = vpop.f32.mrb[0].mxu0
  %v1155 = vadd.f32 0.0, %v1154
  %v1156 = vpop.f32.mrb[0].mxu0
  %v1157 = vadd.f32 0.0, %v1156
  %v1158 = vpop.f32.mrb[0].mxu0
  %v1159 = vadd.f32 0.0, %v1158
  %1160 = vmatprep.mubr.bf16.mxu0 0
  %1161 = vmatmul.mubr.bf16.gmra.mrb[0].mxu0 %v245
  %v1162 = vpop.f32.mrb[0].mxu0
  %v1163 = vadd.f32 0.0, %v1162
  %v1164 = vpop.f32.mrb[0].mxu0
  %v1165 = vadd.f32 0.0, %v1164
  %v1166 = vpop.f32.mrb[0].mxu0
  %v1167 = vadd.f32 0.0, %v1166
  %v1168 = vpop.f32.mrb[0].mxu0
  %v1169 = vadd.f32 0.0, %v1168
  %1170 = vmatprep.mubr.bf16.mxu0 0
  %1171 = vmatmul.mubr.bf16.gmra.mrb[0].mxu0 %v246
  %v1172 = vpop.f32.mrb[0].mxu0
  %v1173 = vadd.f32 0.0, %v1172
  %v1174 = vpop.f32.mrb[0].mxu0
  %v1175 = vadd.f32 0.0, %v1174
  %v1176 = vpop.f32.mrb[0].mxu0
  %v1177 = vadd.f32 0.0, %v1176
  %v1178 = vpop.f32.mrb[0].mxu0
  %v1179 = vadd.f32 0.0, %v1178
  %1180 = vmatprep.mubr.bf16.mxu0 0
  %1181 = vmatmul.mubr.bf16.gmra.mrb[0].mxu0 %v247
  %v1182 = vpop.f32.mrb[0].mxu0
  %v1183 = vadd.f32 0.0, %v1182
  %v1184 = vpop.f32.mrb[0].mxu0
  %v1185 = vadd.f32 0.0, %v1184
  %v1186 = vpop.f32.mrb[0].mxu0
  %v1187 = vadd.f32 0.0, %v1186
  %v1188 = vpop.f32.mrb[0].mxu0
  %v1189 = vadd.f32 0.0, %v1188
  %1190 = vmatprep.mubr.bf16.mxu0 0
  %1191 = vmatmul.mubr.bf16.gmra.mrb[0].mxu0 %v248
  %v1192 = vpop.f32.mrb[0].mxu0
  %v1193 = vadd.f32 0.0, %v1192
  %v1194 = vpop.f32.mrb[0].mxu0
  %v1195 = vadd.f32 0.0, %v1194
  %v1196 = vpop.f32.mrb[0].mxu0
  %v1197 = vadd.f32 0.0, %v1196
  %v1198 = vpop.f32.mrb[0].mxu0
  %v1199 = vadd.f32 0.0, %v1198
  %1200 = vmatprep.mubr.bf16.mxu0 0
  %1201 = vmatmul.mubr.bf16.gmra.mrb[0].mxu0 %v249
  %v1202 = vpop.f32.mrb[0].mxu0
  %v1203 = vadd.f32 0.0, %v1202
  %v1204 = vpop.f32.mrb[0].mxu0
  %v1205 = vadd.f32 0.0, %v1204
  %v1206 = vpop.f32.mrb[0].mxu0
  %v1207 = vadd.f32 0.0, %v1206
  %v1208 = vpop.f32.mrb[0].mxu0
  %v1209 = vadd.f32 0.0, %v1208
  %1210 = vmatprep.mubr.bf16.mxu0 0
  %1211 = vmatmul.mubr.bf16.gmra.mrb[0].mxu0 %v250
  %v1212 = vpop.f32.mrb[0].mxu0
  %v1213 = vadd.f32 0.0, %v1212
  %v1214 = vpop.f32.mrb[0].mxu0
  %v1215 = vadd.f32 0.0, %v1214
  %v1216 = vpop.f32.mrb[0].mxu0
  %v1217 = vadd.f32 0.0, %v1216
  %v1218 = vpop.f32.mrb[0].mxu0
  %v1219 = vadd.f32 0.0, %v1218
  %1220 = vmatprep.mubr.bf16.mxu0 0
  %1221 = vmatmul.mubr.bf16.gmra.mrb[0].mxu0 %v251
  %v1222 = vpop.f32.mrb[0].mxu0
  %v1223 = vadd.f32 0.0, %v1222
  %v1224 = vpop.f32.mrb[0].mxu0
  %v1225 = vadd.f32 0.0, %v1224
  %v1226 = vpop.f32.mrb[0].mxu0
  %v1227 = vadd.f32 0.0, %v1226
  %v1228 = vpop.f32.mrb[0].mxu0
  %v1229 = vadd.f32 0.0, %v1228
  %1230 = vdwg.mxu0
  %1231 = vmatprep.subr.bf16.mxu0 0
  %1232 = vmatpush1.bf16.xpose.msra.mxu0 %v572
  %1233 = vmatprep.subr.bf16.mxu0 0
  %1234 = vmatpush1.bf16.xpose.msra.mxu0 %v573
  %1235 = vmatprep.subr.bf16.mxu0 0
  %1236 = vmatpush1.bf16.xpose.msra.mxu0 %v574
  %1237 = vmatprep.subr.bf16.mxu0 0
  %1238 = vmatpush1.bf16.xpose.msra.mxu0 %v575
  %1239 = vmatprep.subr.bf16.mxu0 0
  %1240 = vmatpush1.bf16.xpose.msra.mxu0 %v576
  %1241 = vmatprep.subr.bf16.mxu0 0
  %1242 = vmatpush1.bf16.xpose.msra.mxu0 %v577
  %1243 = vmatprep.subr.bf16.mxu0 0
  %1244 = vmatpush1.bf16.xpose.msra.mxu0 %v578
  %1245 = vmatprep.subr.bf16.mxu0 0
  %1246 = vmatpush1.bf16.xpose.msra.mxu0 %v579
  %1247 = vmatprep.subr.bf16.mxu0 0
  %1248 = vmatpush1.bf16.xpose.msra.mxu0 %v580
  %1249 = vmatprep.subr.bf16.mxu0 0
  %1250 = vmatpush1.bf16.xpose.msra.mxu0 %v581
  %1251 = vmatprep.subr.bf16.mxu0 0
  %1252 = vmatpush1.bf16.xpose.msra.mxu0 %v582
  %1253 = vmatprep.subr.bf16.mxu0 0
  %1254 = vmatpush1.bf16.xpose.msra.mxu0 %v583
  %1255 = vmatprep.subr.bf16.mxu0 0
  %1256 = vmatpush1.bf16.xpose.msra.mxu0 %v584
  %1257 = vmatprep.subr.bf16.mxu0 0
  %1258 = vmatpush1.bf16.xpose.msra.mxu0 %v585
  %1259 = vmatprep.subr.bf16.mxu0 0
  %1260 = vmatpush1.bf16.xpose.msra.mxu0 %v586
  %1261 = vmatprep.subr.bf16.mxu0 0
  %1262 = vmatpush1.bf16.xpose.msra.mxu0 %v587
  %1263 = vmatprep.mubr.bf16.mxu0 0
  %1264 = vmatmul.mubr.bf16.gmra.mrb[0].mxu0 %v236
  %v1265 = vpop.f32.mrb[0].mxu0
  %v1266 = vadd.f32 0.0, %v1265
  %v1267 = vpop.f32.mrb[0].mxu0
  %v1268 = vadd.f32 0.0, %v1267
  %v1269 = vpop.f32.mrb[0].mxu0
  %v1270 = vadd.f32 0.0, %v1269
  %v1271 = vpop.f32.mrb[0].mxu0
  %v1272 = vadd.f32 0.0, %v1271
  %1273 = vmatprep.mubr.bf16.mxu0 0
  %1274 = vmatmul.mubr.bf16.gmra.mrb[0].mxu0 %v237
  %v1275 = vpop.f32.mrb[0].mxu0
  %v1276 = vadd.f32 0.0, %v1275
  %v1277 = vpop.f32.mrb[0].mxu0
  %v1278 = vadd.f32 0.0, %v1277
  %v1279 = vpop.f32.mrb[0].mxu0
  %v1280 = vadd.f32 0.0, %v1279
  %v1281 = vpop.f32.mrb[0].mxu0
  %v1282 = vadd.f32 0.0, %v1281
  %1283 = vmatprep.mubr.bf16.mxu0 0
  %1284 = vmatmul.mubr.bf16.gmra.mrb[0].mxu0 %v238
  %v1285 = vpop.f32.mrb[0].mxu0
  %v1286 = vadd.f32 0.0, %v1285
  %v1287 = vpop.f32.mrb[0].mxu0
  %v1288 = vadd.f32 0.0, %v1287
  %v1289 = vpop.f32.mrb[0].mxu0
  %v1290 = vadd.f32 0.0, %v1289
  %v1291 = vpop.f32.mrb[0].mxu0
  %v1292 = vadd.f32 0.0, %v1291
  %1293 = vmatprep.mubr.bf16.mxu0 0
  %1294 = vmatmul.mubr.bf16.gmra.mrb[0].mxu0 %v239
  %v1295 = vpop.f32.mrb[0].mxu0
  %v1296 = vadd.f32 0.0, %v1295
  %v1297 = vpop.f32.mrb[0].mxu0
  %v1298 = vadd.f32 0.0, %v1297
  %v1299 = vpop.f32.mrb[0].mxu0
  %v1300 = vadd.f32 0.0, %v1299
  %v1301 = vpop.f32.mrb[0].mxu0
  %v1302 = vadd.f32 0.0, %v1301
  %1303 = vmatprep.mubr.bf16.mxu0 0
  %1304 = vmatmul.mubr.bf16.gmra.mrb[0].mxu0 %v240
  %v1305 = vpop.f32.mrb[0].mxu0
  %v1306 = vadd.f32 0.0, %v1305
  %v1307 = vpop.f32.mrb[0].mxu0
  %v1308 = vadd.f32 0.0, %v1307
  %v1309 = vpop.f32.mrb[0].mxu0
  %v1310 = vadd.f32 0.0, %v1309
  %v1311 = vpop.f32.mrb[0].mxu0
  %v1312 = vadd.f32 0.0, %v1311
  %1313 = vmatprep.mubr.bf16.mxu0 0
  %1314 = vmatmul.mubr.bf16.gmra.mrb[0].mxu0 %v241
  %v1315 = vpop.f32.mrb[0].mxu0
  %v1316 = vadd.f32 0.0, %v1315
  %v1317 = vpop.f32.mrb[0].mxu0
  %v1318 = vadd.f32 0.0, %v1317
  %v1319 = vpop.f32.mrb[0].mxu0
  %v1320 = vadd.f32 0.0, %v1319
  %v1321 = vpop.f32.mrb[0].mxu0
  %v1322 = vadd.f32 0.0, %v1321
  %1323 = vmatprep.mubr.bf16.mxu0 0
  %1324 = vmatmul.mubr.bf16.gmra.mrb[0].mxu0 %v242
  %v1325 = vpop.f32.mrb[0].mxu0
  %v1326 = vadd.f32 0.0, %v1325
  %v1327 = vpop.f32.mrb[0].mxu0
  %v1328 = vadd.f32 0.0, %v1327
  %v1329 = vpop.f32.mrb[0].mxu0
  %v1330 = vadd.f32 0.0, %v1329
  %v1331 = vpop.f32.mrb[0].mxu0
  %v1332 = vadd.f32 0.0, %v1331
  %1333 = vmatprep.mubr.bf16.mxu0 0
  %1334 = vmatmul.mubr.bf16.gmra.mrb[0].mxu0 %v243
  %v1335 = vpop.f32.mrb[0].mxu0
  %v1336 = vadd.f32 0.0, %v1335
  %v1337 = vpop.f32.mrb[0].mxu0
  %v1338 = vadd.f32 0.0, %v1337
  %v1339 = vpop.f32.mrb[0].mxu0
  %v1340 = vadd.f32 0.0, %v1339
  %v1341 = vpop.f32.mrb[0].mxu0
  %v1342 = vadd.f32 0.0, %v1341
  %1343 = vmatprep.mubr.bf16.mxu0 0
  %1344 = vmatmul.mubr.bf16.gmra.mrb[0].mxu0 %v244
  %v1345 = vpop.f32.mrb[0].mxu0
  %v1346 = vadd.f32 0.0, %v1345
  %v1347 = vpop.f32.mrb[0].mxu0
  %v1348 = vadd.f32 0.0, %v1347
  %v1349 = vpop.f32.mrb[0].mxu0
  %v1350 = vadd.f32 0.0, %v1349
  %v1351 = vpop.f32.mrb[0].mxu0
  %v1352 = vadd.f32 0.0, %v1351
  %1353 = vmatprep.mubr.bf16.mxu0 0
  %1354 = vmatmul.mubr.bf16.gmra.mrb[0].mxu0 %v245
  %v1355 = vpop.f32.mrb[0].mxu0
  %v1356 = vadd.f32 0.0, %v1355
  %v1357 = vpop.f32.mrb[0].mxu0
  %v1358 = vadd.f32 0.0, %v1357
  %v1359 = vpop.f32.mrb[0].mxu0
  %v1360 = vadd.f32 0.0, %v1359
  %v1361 = vpop.f32.mrb[0].mxu0
  %v1362 = vadd.f32 0.0, %v1361
  %1363 = vmatprep.mubr.bf16.mxu0 0
  %1364 = vmatmul.mubr.bf16.gmra.mrb[0].mxu0 %v246
  %v1365 = vpop.f32.mrb[0].mxu0
  %v1366 = vadd.f32 0.0, %v1365
  %v1367 = vpop.f32.mrb[0].mxu0
  %v1368 = vadd.f32 0.0, %v1367
  %v1369 = vpop.f32.mrb[0].mxu0
  %v1370 = vadd.f32 0.0, %v1369
  %v1371 = vpop.f32.mrb[0].mxu0
  %v1372 = vadd.f32 0.0, %v1371
  %1373 = vmatprep.mubr.bf16.mxu0 0
  %1374 = vmatmul.mubr.bf16.gmra.mrb[0].mxu0 %v247
  %v1375 = vpop.f32.mrb[0].mxu0
  %v1376 = vadd.f32 0.0, %v1375
  %v1377 = vpop.f32.mrb[0].mxu0
  %v1378 = vadd.f32 0.0, %v1377
  %v1379 = vpop.f32.mrb[0].mxu0
  %v1380 = vadd.f32 0.0, %v1379
  %v1381 = vpop.f32.mrb[0].mxu0
  %v1382 = vadd.f32 0.0, %v1381
  %1383 = vmatprep.mubr.bf16.mxu0 0
  %1384 = vmatmul.mubr.bf16.gmra.mrb[0].mxu0 %v248
  %v1385 = vpop.f32.mrb[0].mxu0
  %v1386 = vadd.f32 0.0, %v1385
  %v1387 = vpop.f32.mrb[0].mxu0
  %v1388 = vadd.f32 0.0, %v1387
  %v1389 = vpop.f32.mrb[0].mxu0
  %v1390 = vadd.f32 0.0, %v1389
  %v1391 = vpop.f32.mrb[0].mxu0
  %v1392 = vadd.f32 0.0, %v1391
  %1393 = vmatprep.mubr.bf16.mxu0 0
  %1394 = vmatmul.mubr.bf16.gmra.mrb[0].mxu0 %v249
  %v1395 = vpop.f32.mrb[0].mxu0
  %v1396 = vadd.f32 0.0, %v1395
  %v1397 = vpop.f32.mrb[0].mxu0
  %v1398 = vadd.f32 0.0, %v1397
  %v1399 = vpop.f32.mrb[0].mxu0
  %v1400 = vadd.f32 0.0, %v1399
  %v1401 = vpop.f32.mrb[0].mxu0
  %v1402 = vadd.f32 0.0, %v1401
  %1403 = vmatprep.mubr.bf16.mxu0 0
  %1404 = vmatmul.mubr.bf16.gmra.mrb[0].mxu0 %v250
  %v1405 = vpop.f32.mrb[0].mxu0
  %v1406 = vadd.f32 0.0, %v1405
  %v1407 = vpop.f32.mrb[0].mxu0
  %v1408 = vadd.f32 0.0, %v1407
  %v1409 = vpop.f32.mrb[0].mxu0
  %v1410 = vadd.f32 0.0, %v1409
  %v1411 = vpop.f32.mrb[0].mxu0
  %v1412 = vadd.f32 0.0, %v1411
  %1413 = vmatprep.mubr.bf16.mxu0 0
  %1414 = vmatmul.mubr.bf16.gmra.mrb[0].mxu0 %v251
  %v1415 = vpop.f32.mrb[0].mxu0
  %v1416 = vadd.f32 0.0, %v1415
  %v1417 = vpop.f32.mrb[0].mxu0
  %v1418 = vadd.f32 0.0, %v1417
  %v1419 = vpop.f32.mrb[0].mxu0
  %v1420 = vadd.f32 0.0, %v1419
  %v1421 = vpop.f32.mrb[0].mxu0
  %v1422 = vadd.f32 0.0, %v1421
  %1423 = vdwg.mxu0
  %1424 = vst [vmem:[%s2] sm:$0xff] %v687
  %1425 = vst [vmem:[%s2 + $0x8] sm:$0xff] %v689
  %1426 = vst [vmem:[%s2 + $0x10] sm:$0xff] %v880
  %1427 = vst [vmem:[%s2 + $0x18] sm:$0xff] %v882
  %1428 = vst [vmem:[%s2 + $0x20] sm:$0xff] %v1073
  %1429 = vst [vmem:[%s2 + $0x28] sm:$0xff] %v1075
  %1430 = vst [vmem:[%s2 + $0x30] sm:$0xff] %v1266
  %1431 = vst [vmem:[%s2 + $0x38] sm:$0xff] %v1268
  %1432 = vst [vmem:[%s2 + $0x40] sm:$0xff] %v691
  %1433 = vst [vmem:[%s2 + $0x48] sm:$0xff] %v693
  %1434 = vst [vmem:[%s2 + $0x50] sm:$0xff] %v884
  %1435 = vst [vmem:[%s2 + $0x58] sm:$0xff] %v886
  %1436 = vst [vmem:[%s2 + $0x60] sm:$0xff] %v1077
  %1437 = vst [vmem:[%s2 + $0x68] sm:$0xff] %v1079
  %1438 = vst [vmem:[%s2 + $0x70] sm:$0xff] %v1270
  %1439 = vst [vmem:[%s2 + $0x78] sm:$0xff] %v1272
  %1440 = vst [vmem:[%s2 + $0x80] sm:$0xff] %v697
  %1441 = vst [vmem:[%s2 + $0x88] sm:$0xff] %v699
  %1442 = vst [vmem:[%s2 + $0x90] sm:$0xff] %v890
  %1443 = vst [vmem:[%s2 + $0x98] sm:$0xff] %v892
  %1444 = vst [vmem:[%s2 + $0xa0] sm:$0xff] %v1083
  %1445 = vst [vmem:[%s2 + $0xa8] sm:$0xff] %v1085
  %1446 = vst [vmem:[%s2 + $0xb0] sm:$0xff] %v1276
  %1447 = vst [vmem:[%s2 + $0xb8] sm:$0xff] %v1278
  %1448 = vst [vmem:[%s2 + $0xc0] sm:$0xff] %v701
  %1449 = vst [vmem:[%s2 + $0xc8] sm:$0xff] %v703
  %1450 = vst [vmem:[%s2 + $0xd0] sm:$0xff] %v894
  %1451 = vst [vmem:[%s2 + $0xd8] sm:$0xff] %v896
  %1452 = vst [vmem:[%s2 + $0xe0] sm:$0xff] %v1087
  %1453 = vst [vmem:[%s2 + $0xe8] sm:$0xff] %v1089
  %1454 = vst [vmem:[%s2 + $0xf0] sm:$0xff] %v1280
  %1455 = vst [vmem:[%s2 + $0xf8] sm:$0xff] %v1282
  %1456 = vst [vmem:[%s2 + $0x100] sm:$0xff] %v707
  %1457 = vst [vmem:[%s2 + $0x108] sm:$0xff] %v709
  %1458 = vst [vmem:[%s2 + $0x110] sm:$0xff] %v900
  %1459 = vst [vmem:[%s2 + $0x118] sm:$0xff] %v902
  %1460 = vst [vmem:[%s2 + $0x120] sm:$0xff] %v1093
  %1461 = vst [vmem:[%s2 + $0x128] sm:$0xff] %v1095
  %1462 = vst [vmem:[%s2 + $0x130] sm:$0xff] %v1286
  %1463 = vst [vmem:[%s2 + $0x138] sm:$0xff] %v1288
  %1464 = vst [vmem:[%s2 + $0x140] sm:$0xff] %v711
  %1465 = vst [vmem:[%s2 + $0x148] sm:$0xff] %v713
  %1466 = vst [vmem:[%s2 + $0x150] sm:$0xff] %v904
  %1467 = vst [vmem:[%s2 + $0x158] sm:$0xff] %v906
  %1468 = vst [vmem:[%s2 + $0x160] sm:$0xff] %v1097
  %1469 = vst [vmem:[%s2 + $0x168] sm:$0xff] %v1099
  %1470 = vst [vmem:[%s2 + $0x170] sm:$0xff] %v1290
  %1471 = vst [vmem:[%s2 + $0x178] sm:$0xff] %v1292
  %1472 = vst [vmem:[%s2 + $0x180] sm:$0xff] %v717
  %1473 = vst [vmem:[%s2 + $0x188] sm:$0xff] %v719
  %1474 = vst [vmem:[%s2 + $0x190] sm:$0xff] %v910
  %1475 = vst [vmem:[%s2 + $0x198] sm:$0xff] %v912
  %1476 = vst [vmem:[%s2 + $0x1a0] sm:$0xff] %v1103
  %1477 = vst [vmem:[%s2 + $0x1a8] sm:$0xff] %v1105
  %1478 = vst [vmem:[%s2 + $0x1b0] sm:$0xff] %v1296
  %1479 = vst [vmem:[%s2 + $0x1b8] sm:$0xff] %v1298
  %1480 = vst [vmem:[%s2 + $0x1c0] sm:$0xff] %v721
  %1481 = vst [vmem:[%s2 + $0x1c8] sm:$0xff] %v723
  %1482 = vst [vmem:[%s2 + $0x1d0] sm:$0xff] %v914
  %1483 = vst [vmem:[%s2 + $0x1d8] sm:$0xff] %v916
  %1484 = vst [vmem:[%s2 + $0x1e0] sm:$0xff] %v1107
  %1485 = vst [vmem:[%s2 + $0x1e8] sm:$0xff] %v1109
  %1486 = vst [vmem:[%s2 + $0x1f0] sm:$0xff] %v1300
  %1487 = vst [vmem:[%s2 + $0x1f8] sm:$0xff] %v1302
  %1488 = vst [vmem:[%s2 + $0x200] sm:$0xff] %v727
  %1489 = vst [vmem:[%s2 + $0x208] sm:$0xff] %v729
  %1490 = vst [vmem:[%s2 + $0x210] sm:$0xff] %v920
  %1491 = vst [vmem:[%s2 + $0x218] sm:$0xff] %v922
  %1492 = vst [vmem:[%s2 + $0x220] sm:$0xff] %v1113
  %1493 = vst [vmem:[%s2 + $0x228] sm:$0xff] %v1115
  %1494 = vst [vmem:[%s2 + $0x230] sm:$0xff] %v1306
  %1495 = vst [vmem:[%s2 + $0x238] sm:$0xff] %v1308
  %1496 = vst [vmem:[%s2 + $0x240] sm:$0xff] %v731
  %1497 = vst [vmem:[%s2 + $0x248] sm:$0xff] %v733
  %1498 = vst [vmem:[%s2 + $0x250] sm:$0xff] %v924
  %1499 = vst [vmem:[%s2 + $0x258] sm:$0xff] %v926
  %1500 = vst [vmem:[%s2 + $0x260] sm:$0xff] %v1117
  %1501 = vst [vmem:[%s2 + $0x268] sm:$0xff] %v1119
  %1502 = vst [vmem:[%s2 + $0x270] sm:$0xff] %v1310
  %1503 = vst [vmem:[%s2 + $0x278] sm:$0xff] %v1312
  %1504 = vst [vmem:[%s2 + $0x280] sm:$0xff] %v737
  %1505 = vst [vmem:[%s2 + $0x288] sm:$0xff] %v739
  %1506 = vst [vmem:[%s2 + $0x290] sm:$0xff] %v930
  %1507 = vst [vmem:[%s2 + $0x298] sm:$0xff] %v932
  %1508 = vst [vmem:[%s2 + $0x2a0] sm:$0xff] %v1123
  %1509 = vst [vmem:[%s2 + $0x2a8] sm:$0xff] %v1125
  %1510 = vst [vmem:[%s2 + $0x2b0] sm:$0xff] %v1316
  %1511 = vst [vmem:[%s2 + $0x2b8] sm:$0xff] %v1318
  %1512 = vst [vmem:[%s2 + $0x2c0] sm:$0xff] %v741
  %1513 = vst [vmem:[%s2 + $0x2c8] sm:$0xff] %v743
  %1514 = vst [vmem:[%s2 + $0x2d0] sm:$0xff] %v934
  %1515 = vst [vmem:[%s2 + $0x2d8] sm:$0xff] %v936
  %1516 = vst [vmem:[%s2 + $0x2e0] sm:$0xff] %v1127
  %1517 = vst [vmem:[%s2 + $0x2e8] sm:$0xff] %v1129
  %1518 = vst [vmem:[%s2 + $0x2f0] sm:$0xff] %v1320
  %1519 = vst [vmem:[%s2 + $0x2f8] sm:$0xff] %v1322
  %1520 = vst [vmem:[%s2 + $0x300] sm:$0xff] %v747
  %1521 = vst [vmem:[%s2 + $0x308] sm:$0xff] %v749
  %1522 = vst [vmem:[%s2 + $0x310] sm:$0xff] %v940
  %1523 = vst [vmem:[%s2 + $0x318] sm:$0xff] %v942
  %1524 = vst [vmem:[%s2 + $0x320] sm:$0xff] %v1133
  %1525 = vst [vmem:[%s2 + $0x328] sm:$0xff] %v1135
  %1526 = vst [vmem:[%s2 + $0x330] sm:$0xff] %v1326
  %1527 = vst [vmem:[%s2 + $0x338] sm:$0xff] %v1328
  %1528 = vst [vmem:[%s2 + $0x340] sm:$0xff] %v751
  %1529 = vst [vmem:[%s2 + $0x348] sm:$0xff] %v753
  %1530 = vst [vmem:[%s2 + $0x350] sm:$0xff] %v944
  %1531 = vst [vmem:[%s2 + $0x358] sm:$0xff] %v946
  %1532 = vst [vmem:[%s2 + $0x360] sm:$0xff] %v1137
  %1533 = vst [vmem:[%s2 + $0x368] sm:$0xff] %v1139
  %1534 = vst [vmem:[%s2 + $0x370] sm:$0xff] %v1330
  %1535 = vst [vmem:[%s2 + $0x378] sm:$0xff] %v1332
  %1536 = vst [vmem:[%s2 + $0x380] sm:$0xff] %v757
  %1537 = vst [vmem:[%s2 + $0x388] sm:$0xff] %v759
  %1538 = vst [vmem:[%s2 + $0x390] sm:$0xff] %v950
  %1539 = vst [vmem:[%s2 + $0x398] sm:$0xff] %v952
  %1540 = vst [vmem:[%s2 + $0x3a0] sm:$0xff] %v1143
  %1541 = vst [vmem:[%s2 + $0x3a8] sm:$0xff] %v1145
  %1542 = vst [vmem:[%s2 + $0x3b0] sm:$0xff] %v1336
  %1543 = vst [vmem:[%s2 + $0x3b8] sm:$0xff] %v1338
  %1544 = vst [vmem:[%s2 + $0x3c0] sm:$0xff] %v761
  %1545 = vst [vmem:[%s2 + $0x3c8] sm:$0xff] %v763
  %1546 = vst [vmem:[%s2 + $0x3d0] sm:$0xff] %v954
  %1547 = vst [vmem:[%s2 + $0x3d8] sm:$0xff] %v956
  %1548 = vst [vmem:[%s2 + $0x3e0] sm:$0xff] %v1147
  %1549 = vst [vmem:[%s2 + $0x3e8] sm:$0xff] %v1149
  %1550 = vst [vmem:[%s2 + $0x3f0] sm:$0xff] %v1340
  %1551 = vst [vmem:[%s2 + $0x3f8] sm:$0xff] %v1342
  %1552 = vst [vmem:[%s2 + $0x400] sm:$0xff] %v767
  %1553 = vst [vmem:[%s2 + $0x408] sm:$0xff] %v769
  %1554 = vst [vmem:[%s2 + $0x410] sm:$0xff] %v960
  %1555 = vst [vmem:[%s2 + $0x418] sm:$0xff] %v962
  %1556 = vst [vmem:[%s2 + $0x420] sm:$0xff] %v1153
  %1557 = vst [vmem:[%s2 + $0x428] sm:$0xff] %v1155
  %1558 = vst [vmem:[%s2 + $0x430] sm:$0xff] %v1346
  %1559 = vst [vmem:[%s2 + $0x438] sm:$0xff] %v1348
  %1560 = vst [vmem:[%s2 + $0x440] sm:$0xff] %v771
  %1561 = vst [vmem:[%s2 + $0x448] sm:$0xff] %v773
  %1562 = vst [vmem:[%s2 + $0x450] sm:$0xff] %v964
  %1563 = vst [vmem:[%s2 + $0x458] sm:$0xff] %v966
  %1564 = vst [vmem:[%s2 + $0x460] sm:$0xff] %v1157
  %1565 = vst [vmem:[%s2 + $0x468] sm:$0xff] %v1159
  %1566 = vst [vmem:[%s2 + $0x470] sm:$0xff] %v1350
  %1567 = vst [vmem:[%s2 + $0x478] sm:$0xff] %v1352
  %1568 = vst [vmem:[%s2 + $0x480] sm:$0xff] %v777
  %1569 = vst [vmem:[%s2 + $0x488] sm:$0xff] %v779
  %1570 = vst [vmem:[%s2 + $0x490] sm:$0xff] %v970
  %1571 = vst [vmem:[%s2 + $0x498] sm:$0xff] %v972
  %1572 = vst [vmem:[%s2 + $0x4a0] sm:$0xff] %v1163
  %1573 = vst [vmem:[%s2 + $0x4a8] sm:$0xff] %v1165
  %1574 = vst [vmem:[%s2 + $0x4b0] sm:$0xff] %v1356
  %1575 = vst [vmem:[%s2 + $0x4b8] sm:$0xff] %v1358
  %1576 = vst [vmem:[%s2 + $0x4c0] sm:$0xff] %v781
  %1577 = vst [vmem:[%s2 + $0x4c8] sm:$0xff] %v783
  %1578 = vst [vmem:[%s2 + $0x4d0] sm:$0xff] %v974
  %1579 = vst [vmem:[%s2 + $0x4d8] sm:$0xff] %v976
  %1580 = vst [vmem:[%s2 + $0x4e0] sm:$0xff] %v1167
  %1581 = vst [vmem:[%s2 + $0x4e8] sm:$0xff] %v1169
  %1582 = vst [vmem:[%s2 + $0x4f0] sm:$0xff] %v1360
  %1583 = vst [vmem:[%s2 + $0x4f8] sm:$0xff] %v1362
  %1584 = vst [vmem:[%s2 + $0x500] sm:$0xff] %v787
  %1585 = vst [vmem:[%s2 + $0x508] sm:$0xff] %v789
  %1586 = vst [vmem:[%s2 + $0x510] sm:$0xff] %v980
  %1587 = vst [vmem:[%s2 + $0x518] sm:$0xff] %v982
  %1588 = vst [vmem:[%s2 + $0x520] sm:$0xff] %v1173
  %1589 = vst [vmem:[%s2 + $0x528] sm:$0xff] %v1175
  %1590 = vst [vmem:[%s2 + $0x530] sm:$0xff] %v1366
  %1591 = vst [vmem:[%s2 + $0x538] sm:$0xff] %v1368
  %1592 = vst [vmem:[%s2 + $0x540] sm:$0xff] %v791
  %1593 = vst [vmem:[%s2 + $0x548] sm:$0xff] %v793
  %1594 = vst [vmem:[%s2 + $0x550] sm:$0xff] %v984
  %1595 = vst [vmem:[%s2 + $0x558] sm:$0xff] %v986
  %1596 = vst [vmem:[%s2 + $0x560] sm:$0xff] %v1177
  %1597 = vst [vmem:[%s2 + $0x568] sm:$0xff] %v1179
  %1598 = vst [vmem:[%s2 + $0x570] sm:$0xff] %v1370
  %1599 = vst [vmem:[%s2 + $0x578] sm:$0xff] %v1372
  %1600 = vst [vmem:[%s2 + $0x580] sm:$0xff] %v797
  %1601 = vst [vmem:[%s2 + $0x588] sm:$0xff] %v799
  %1602 = vst [vmem:[%s2 + $0x590] sm:$0xff] %v990
  %1603 = vst [vmem:[%s2 + $0x598] sm:$0xff] %v992
  %1604 = vst [vmem:[%s2 + $0x5a0] sm:$0xff] %v1183
  %1605 = vst [vmem:[%s2 + $0x5a8] sm:$0xff] %v1185
  %1606 = vst [vmem:[%s2 + $0x5b0] sm:$0xff] %v1376
  %1607 = vst [vmem:[%s2 + $0x5b8] sm:$0xff] %v1378
  %1608 = vst [vmem:[%s2 + $0x5c0] sm:$0xff] %v801
  %1609 = vst [vmem:[%s2 + $0x5c8] sm:$0xff] %v803
  %1610 = vst [vmem:[%s2 + $0x5d0] sm:$0xff] %v994
  %1611 = vst [vmem:[%s2 + $0x5d8] sm:$0xff] %v996
  %1612 = vst [vmem:[%s2 + $0x5e0] sm:$0xff] %v1187
  %1613 = vst [vmem:[%s2 + $0x5e8] sm:$0xff] %v1189
  %1614 = vst [vmem:[%s2 + $0x5f0] sm:$0xff] %v1380
  %1615 = vst [vmem:[%s2 + $0x5f8] sm:$0xff] %v1382
  %1616 = vst [vmem:[%s2 + $0x600] sm:$0xff] %v807
  %1617 = vst [vmem:[%s2 + $0x608] sm:$0xff] %v809
  %1618 = vst [vmem:[%s2 + $0x610] sm:$0xff] %v1000
  %1619 = vst [vmem:[%s2 + $0x618] sm:$0xff] %v1002
  %1620 = vst [vmem:[%s2 + $0x620] sm:$0xff] %v1193
  %1621 = vst [vmem:[%s2 + $0x628] sm:$0xff] %v1195
  %1622 = vst [vmem:[%s2 + $0x630] sm:$0xff] %v1386
  %1623 = vst [vmem:[%s2 + $0x638] sm:$0xff] %v1388
  %1624 = vst [vmem:[%s2 + $0x640] sm:$0xff] %v811
  %1625 = vst [vmem:[%s2 + $0x648] sm:$0xff] %v813
  %1626 = vst [vmem:[%s2 + $0x650] sm:$0xff] %v1004
  %1627 = vst [vmem:[%s2 + $0x658] sm:$0xff] %v1006
  %1628 = vst [vmem:[%s2 + $0x660] sm:$0xff] %v1197
  %1629 = vst [vmem:[%s2 + $0x668] sm:$0xff] %v1199
  %1630 = vst [vmem:[%s2 + $0x670] sm:$0xff] %v1390
  %1631 = vst [vmem:[%s2 + $0x678] sm:$0xff] %v1392
  %1632 = vst [vmem:[%s2 + $0x680] sm:$0xff] %v817
  %1633 = vst [vmem:[%s2 + $0x688] sm:$0xff] %v819
  %1634 = vst [vmem:[%s2 + $0x690] sm:$0xff] %v1010
  %1635 = vst [vmem:[%s2 + $0x698] sm:$0xff] %v1012
  %1636 = vst [vmem:[%s2 + $0x6a0] sm:$0xff] %v1203
  %1637 = vst [vmem:[%s2 + $0x6a8] sm:$0xff] %v1205
  %1638 = vst [vmem:[%s2 + $0x6b0] sm:$0xff] %v1396
  %1639 = vst [vmem:[%s2 + $0x6b8] sm:$0xff] %v1398
  %1640 = vst [vmem:[%s2 + $0x6c0] sm:$0xff] %v821
  %1641 = vst [vmem:[%s2 + $0x6c8] sm:$0xff] %v823
  %1642 = vst [vmem:[%s2 + $0x6d0] sm:$0xff] %v1014
  %1643 = vst [vmem:[%s2 + $0x6d8] sm:$0xff] %v1016
  %1644 = vst [vmem:[%s2 + $0x6e0] sm:$0xff] %v1207
  %1645 = vst [vmem:[%s2 + $0x6e8] sm:$0xff] %v1209
  %1646 = vst [vmem:[%s2 + $0x6f0] sm:$0xff] %v1400
  %1647 = vst [vmem:[%s2 + $0x6f8] sm:$0xff] %v1402
  %1648 = vst [vmem:[%s2 + $0x700] sm:$0xff] %v827
  %1649 = vst [vmem:[%s2 + $0x708] sm:$0xff] %v829
  %1650 = vst [vmem:[%s2 + $0x710] sm:$0xff] %v1020
  %1651 = vst [vmem:[%s2 + $0x718] sm:$0xff] %v1022
  %1652 = vst [vmem:[%s2 + $0x720] sm:$0xff] %v1213
  %1653 = vst [vmem:[%s2 + $0x728] sm:$0xff] %v1215
  %1654 = vst [vmem:[%s2 + $0x730] sm:$0xff] %v1406
  %1655 = vst [vmem:[%s2 + $0x738] sm:$0xff] %v1408
  %1656 = vst [vmem:[%s2 + $0x740] sm:$0xff] %v831
  %1657 = vst [vmem:[%s2 + $0x748] sm:$0xff] %v833
  %1658 = vst [vmem:[%s2 + $0x750] sm:$0xff] %v1024
  %1659 = vst [vmem:[%s2 + $0x758] sm:$0xff] %v1026
  %1660 = vst [vmem:[%s2 + $0x760] sm:$0xff] %v1217
  %1661 = vst [vmem:[%s2 + $0x768] sm:$0xff] %v1219
  %1662 = vst [vmem:[%s2 + $0x770] sm:$0xff] %v1410
  %1663 = vst [vmem:[%s2 + $0x778] sm:$0xff] %v1412
  %1664 = vst [vmem:[%s2 + $0x780] sm:$0xff] %v837
  %1665 = vst [vmem:[%s2 + $0x788] sm:$0xff] %v839
  %1666 = vst [vmem:[%s2 + $0x790] sm:$0xff] %v1030
  %1667 = vst [vmem:[%s2 + $0x798] sm:$0xff] %v1032
  %1668 = vst [vmem:[%s2 + $0x7a0] sm:$0xff] %v1223
  %1669 = vst [vmem:[%s2 + $0x7a8] sm:$0xff] %v1225
  %1670 = vst [vmem:[%s2 + $0x7b0] sm:$0xff] %v1416
  %1671 = vst [vmem:[%s2 + $0x7b8] sm:$0xff] %v1418
  %1672 = vst [vmem:[%s2 + $0x7c0] sm:$0xff] %v841
  %1673 = vst [vmem:[%s2 + $0x7c8] sm:$0xff] %v843
  %1674 = vst [vmem:[%s2 + $0x7d0] sm:$0xff] %v1034
  %1675 = vst [vmem:[%s2 + $0x7d8] sm:$0xff] %v1036
  %1676 = vst [vmem:[%s2 + $0x7e0] sm:$0xff] %v1227
  %1677 = vst [vmem:[%s2 + $0x7e8] sm:$0xff] %v1229
  %1678 = vst [vmem:[%s2 + $0x7f0] sm:$0xff] %v1420
  %1679 = vst [vmem:[%s2 + $0x7f8] sm:$0xff] %v1422
  // Predicated region
  $region10: #{distmult_all_scores.1} parent=0 // pred_check
    _
  $region11: #{distmult_all_scores.1} parent=0 // pred_check_branch
    %1681 = sbr.rel (0) target = $region13
  $region12: #{distmult_all_scores.1} parent=0 // pred_region
    _
  $region13: #{distmult_all_scores.1} parent=0 // pred_fallthru
    _
  // Predicated region
  $region14: #{distmult_all_scores.1} parent=0 // pred_check
    _
  $region15: #{distmult_all_scores.1} parent=0 // pred_check_branch
    %1683 = sbr.rel (0) target = $region17
  $region16: #{distmult_all_scores.1} parent=0 // pred_region
    _
  $region17: #{distmult_all_scores.1} parent=0 // pred_fallthru
    _

</llo_original>
